<compile_context>
chip_gen: v6e
topology: v6e:2x2x1
jax: 0.10.0
libtpu: 0.0.40
codegen_flags: <defaults>
</compile_context>

<pallas_src>
import jax
import jax.numpy as jnp
from jax import lax
from jax.experimental import pallas as pl
from jax.experimental.pallas import tpu as pltpu

INPUT_SIZE = 2
HIDDEN = 64
OUTPUT = 5
NUM_LAYER = 2  # hard-coded as two stacked LSTM layers below


def _make_kernel(T, B):
    H = HIDDEN
    H2 = 2 * H          # 128 : width of the carried [h0 | h1] / [c0 | c1]
    H8 = 8 * H          # 512 : fused gate width [i0 i1 f0 f1 g0 g1 o0 o1]

    def kernel(xext_ref,   # ((T+1)*B, INPUT_SIZE+1)
               wx_ref,     # (INPUT_SIZE+1, 8H)  hoisted input proj + layer-1 bias row
               bx_ref,     # (1, 8H)             layer-0 bias in layer-0 columns
               wrec_ref,   # (2H, 8H)            fused recurrent RHS
               wout_ref,   # (H, 128)            lane-padded head weight
               bout_ref,   # (1, 128)
               out_ref):   # (T, 128)
        # ---- hoisted input projection + biases for all T+1 super-steps ----
        pre_x = (jnp.dot(xext_ref[...], wx_ref[...],
                         preferred_element_type=jnp.float32)
                 + bx_ref[...])                             # ((T+1)*B, 8H)

        h01 = jnp.zeros((B, H2), jnp.float32)               # [h0 | h1]
        c01 = jnp.zeros((B, H2), jnp.float32)               # [c0 | c1]
        last_rows = []

        # T is small and static -> fully unrolled; states live in vregs.
        # Super-step s: layer 0 processes time step s, layer 1 time step s-1.
        for s in range(T + 1):
            px = pre_x[s * B:(s + 1) * B, :]                # (B, 8H)
            if s == 0:
                pre = px                                    # h01 == 0: skip matmul
            else:
                pre = px + jnp.dot(h01, wrec_ref[...],
                                   preferred_element_type=jnp.float32)

            # single contiguous sigmoid over (B, 8H); lane-aligned 128-wide slices
            sig = jax.nn.sigmoid(pre)
            i01 = sig[:, 0:H2]
            f01 = sig[:, H2:2 * H2]
            g01 = 2.0 * sig[:, 2 * H2:3 * H2] - 1.0         # tanh via folded 2x scale
            o01 = sig[:, 3 * H2:4 * H2]

            c01 = f01 * c01 + i01 * g01
            h01 = o01 * jnp.tanh(c01)

            if s >= 1:
                # layer-1 hidden of the LAST batch element, time step s-1
                last_rows.append(h01[B - 1:B, H:H2])

        # ---- deferred, lane-padded linear head: one matmul + one store ----
        h_last = jnp.concatenate(last_rows, axis=0)         # (T, H)
        out_ref[...] = (jnp.dot(h_last, wout_ref[...],
                                preferred_element_type=jnp.float32)
                        + bout_ref[...])

    return kernel


def prepare_params(params):
    """One-time host-side weight prep (call once per parameter set)."""
    H = HIDDEN
    (wih0, whh0, bih0, bhh0, wih1, whh1, bih1, bhh1, wout, bout) = params

    def scale_g(w_t):
        # w_t: (K, 4H) in PyTorch gate order (i, f, g, o); scale g block by 2
        # so tanh(x) can be computed as 2*sigmoid(2x) - 1 in-kernel.
        return jnp.concatenate([w_t[:, :2 * H],
                                2.0 * w_t[:, 2 * H:3 * H],
                                w_t[:, 3 * H:]], axis=1)

    A0 = scale_g(wih0.T)                                    # (I, 4H)
    R0 = scale_g(whh0.T)                                    # (H, 4H)
    b0 = scale_g((bih0 + bhh0).reshape(1, -1))              # (1, 4H)
    A1 = scale_g(wih1.T)                                    # (H, 4H)
    R1 = scale_g(whh1.T)                                    # (H, 4H)
    b1 = scale_g((bih1 + bhh1).reshape(1, -1))              # (1, 4H)

    def interleave(a, b):
        # (K, 4H) x (K, 4H) -> (K, 8H) with columns [a_i b_i a_f b_f a_g b_g a_o b_o]
        K = a.shape[0]
        return jnp.stack([a.reshape(K, 4, H), b.reshape(K, 4, H)],
                         axis=2).reshape(K, 8 * H)

    # Fused recurrent RHS; LHS is the carried [h0 | h1] (B, 2H).
    w_rec = jnp.concatenate(
        [interleave(R0, A1),                                # rows fed by h0
         interleave(jnp.zeros_like(R0), R1)],               # rows fed by h1
        axis=0)                                             # (2H, 8H)

    # Hoisted x-projection RHS.  x_ext = [x | indicator(layer-1 active)];
    # the indicator row carries b1 so the s=0 super-step sees an exactly-zero
    # layer-1 pre-activation (=> c1/h1 stay zero) without any in-loop masking.
    zI = jnp.zeros((INPUT_SIZE, 4 * H), jnp.float32)
    z1 = jnp.zeros((1, 4 * H), jnp.float32)
    w_x = jnp.concatenate([interleave(A0, zI),
                           interleave(z1, b1)], axis=0)     # (I+1, 8H)
    b_x = interleave(b0, z1)                                # (1, 8H)

    # Lane-padded head (unmasked store, lane-aligned matmul N).
    w_out = jnp.zeros((H, 128), jnp.float32).at[:, :OUTPUT].set(wout.T)
    b_out = jnp.zeros((1, 128), jnp.float32).at[:, :OUTPUT].set(bout)

    return (w_x, b_x, w_rec, w_out, b_out)


def make_net_forward(T, B):
    """Returns a jitted forward(x, prepped) -> (T, OUTPUT)."""
    kernel = _make_kernel(T, B)
    vmem = pltpu.MemorySpace.VMEM
    pc = pl.pallas_call(
        kernel,
        out_shape=jax.ShapeDtypeStruct((T, 128), jnp.float32),
        in_specs=[pl.BlockSpec(memory_space=vmem)] * 6,
        out_specs=pl.BlockSpec(memory_space=vmem),
    )

    @jax.jit
    def forward(x, prepped):
        x_flat = x.reshape(T * B, INPUT_SIZE).astype(jnp.float32)
        # pad one extra time block (layer-0 output there is discarded) and add
        # the layer-1-bias indicator column (0 for the first super-step).
        x_pad = jnp.concatenate(
            [x_flat, jnp.zeros((B, INPUT_SIZE), jnp.float32)], axis=0)
        ind = jnp.concatenate(
            [jnp.zeros((B, 1), jnp.float32), jnp.ones((T * B, 1), jnp.float32)],
            axis=0)
        x_ext = jnp.concatenate([x_pad, ind], axis=1)       # ((T+1)*B, I+1)
        out_pad = pc(x_ext, *prepped)                       # (T, 128)
        return out_pad[:, :OUTPUT]

    return forward


def net_forward(x, params):
    """Convenience wrapper: prep + forward (prefer prepare_params + make_net_forward)."""
    T, B, _ = x.shape
    return make_net_forward(T, B)(x, prepare_params(params))


def init_params(key):
    """Deterministic init mimicking PyTorch's U(-1/sqrt(H), 1/sqrt(H))."""
    k = 1.0 / float(jnp.sqrt(jnp.float32(HIDDEN)))
    shapes = [
        (4 * HIDDEN, INPUT_SIZE), (4 * HIDDEN, HIDDEN), (4 * HIDDEN,), (4 * HIDDEN,),  # layer 0
        (4 * HIDDEN, HIDDEN), (4 * HIDDEN, HIDDEN), (4 * HIDDEN,), (4 * HIDDEN,),      # layer 1
        (OUTPUT, HIDDEN), (OUTPUT,),                                                   # linear head
    ]
    keys = jax.random.split(key, len(shapes))
    return tuple(jax.random.uniform(kk, s, jnp.float32, -k, k)
                 for kk, s in zip(keys, shapes))


def net_ref(x, params):
    """Pure-JAX reference of the PyTorch forward (for verification)."""
    (wih0, whh0, bih0, bhh0, wih1, whh1, bih1, bhh1, wout, bout) = params
    T, B, _ = x.shape
    H = HIDDEN

    def lstm_layer(inp, wih, whh, bih, bhh):
        def step(carry, x_t):
            h, c = carry
            pre = x_t @ wih.T + h @ whh.T + bih + bhh
            i = jax.nn.sigmoid(pre[:, :H])
            f = jax.nn.sigmoid(pre[:, H:2 * H])
            g = jnp.tanh(pre[:, 2 * H:3 * H])
            o = jax.nn.sigmoid(pre[:, 3 * H:])
            c = f * c + i * g
            h = o * jnp.tanh(c)
            return (h, c), h
        zeros = jnp.zeros((B, H), jnp.float32)
        _, hs = lax.scan(step, (zeros, zeros), inp)
        return hs

    h1 = lstm_layer(x, wih0, whh0, bih0, bhh0)
    h2 = lstm_layer(h1, wih1, whh1, bih1, bhh1)
    return h2[:, -1, :] @ wout.T + bout  # (T, OUTPUT)


if __name__ == "__main__":
    key = jax.random.PRNGKey(0)
    pkey, xkey = jax.random.split(key)
    params = init_params(pkey)

    T, B = 8, 4  # seq_len=8, batch=4 (time-major, matching nn.LSTM default)
    x = jax.random.normal(xkey, (T, B, INPUT_SIZE), jnp.float32)

    prepped = prepare_params(params)          # one-time host-side weight prep
    forward = make_net_forward(T, B)          # jitted per-call path

    out = forward(x, prepped)
    jax.block_until_ready(out)

    ref = net_ref(x, params)
    assert out.shape == (T, OUTPUT), out.shape
    err = float(jnp.max(jnp.abs(out - ref)))
    assert jnp.allclose(out, ref, atol=1e-4, rtol=1e-4), err
    print("KERNEL_OK")
</pallas_src>

<mosaic_0001>
module attributes {stable_mosaic.version = 11 : i64} {
  func.func @kernel(%arg0: memref<36x3xf32, #tpu.memory_space<vmem>>, %arg1: memref<3x512xf32, #tpu.memory_space<vmem>>, %arg2: memref<1x512xf32, #tpu.memory_space<vmem>>, %arg3: memref<128x512xf32, #tpu.memory_space<vmem>>, %arg4: memref<64x128xf32, #tpu.memory_space<vmem>>, %arg5: memref<1x128xf32, #tpu.memory_space<vmem>>, %arg6: memref<8x128xf32, #tpu.memory_space<vmem>>) attributes {dimension_semantics = [], scalar_prefetch = 0 : i64, scratch_operands = 0 : i64, tpu.core_type = #tpu.core_type<tc>} {
    %c0 = arith.constant 0 : index
    %c0_0 = arith.constant 0 : index
    %0 = vector.load %arg0[%c0, %c0_0] : memref<36x3xf32, #tpu.memory_space<vmem>>, vector<36x3xf32>
    %c0_1 = arith.constant 0 : index
    %c0_2 = arith.constant 0 : index
    %1 = vector.load %arg1[%c0_1, %c0_2] : memref<3x512xf32, #tpu.memory_space<vmem>>, vector<3x512xf32>
    %cst = arith.constant dense<0.000000e+00> : vector<36x512xf32>
    %2 = tpu.matmul %0, %1, %cst {dimension_numbers = #tpu.dot_dimension_numbers<[1], [0], [0], [1], [0, 0, 1, 1], [], []>} : vector<36x3xf32>, vector<3x512xf32>, vector<36x512xf32> -> vector<36x512xf32>
    %c0_3 = arith.constant 0 : index
    %c0_4 = arith.constant 0 : index
    %3 = vector.load %arg2[%c0_3, %c0_4] : memref<1x512xf32, #tpu.memory_space<vmem>>, vector<1x512xf32>
    %4 = vector.broadcast %3 : vector<1x512xf32> to vector<36x512xf32>
    %5 = arith.addf %2, %4 : vector<36x512xf32>
    %cst_5 = arith.constant 0.000000e+00 : f32
    %6 = vector.broadcast %cst_5 : f32 to vector<4x128xf32>
    %7 = vector.extract_strided_slice %5 {offsets = [0, 0], sizes = [4, 512], strides = [1, 1]} : vector<36x512xf32> to vector<4x512xf32>
    %8 = arith.negf %7 : vector<4x512xf32>
    %9 = math.exp %8 : vector<4x512xf32>
    %cst_6 = arith.constant 1.000000e+00 : f32
    %10 = vector.broadcast %cst_6 : f32 to vector<4x512xf32>
    %11 = arith.addf %10, %9 : vector<4x512xf32>
    %12 = arith.divf %10, %11 : vector<4x512xf32>
    %13 = vector.extract_strided_slice %12 {offsets = [0, 0], sizes = [4, 128], strides = [1, 1]} : vector<4x512xf32> to vector<4x128xf32>
    %14 = vector.extract_strided_slice %12 {offsets = [0, 128], sizes = [4, 128], strides = [1, 1]} : vector<4x512xf32> to vector<4x128xf32>
    %15 = vector.extract_strided_slice %12 {offsets = [0, 256], sizes = [4, 128], strides = [1, 1]} : vector<4x512xf32> to vector<4x128xf32>
    %cst_7 = arith.constant 2.000000e+00 : f32
    %16 = vector.broadcast %cst_7 : f32 to vector<4x128xf32>
    %17 = arith.mulf %16, %15 : vector<4x128xf32>
    %cst_8 = arith.constant 1.000000e+00 : f32
    %18 = vector.broadcast %cst_8 : f32 to vector<4x128xf32>
    %19 = arith.subf %17, %18 : vector<4x128xf32>
    %20 = vector.extract_strided_slice %12 {offsets = [0, 384], sizes = [4, 128], strides = [1, 1]} : vector<4x512xf32> to vector<4x128xf32>
    %21 = arith.mulf %14, %6 : vector<4x128xf32>
    %22 = arith.mulf %13, %19 : vector<4x128xf32>
    %23 = arith.addf %21, %22 : vector<4x128xf32>
    %24 = math.tanh %23 : vector<4x128xf32>
    %25 = arith.mulf %20, %24 : vector<4x128xf32>
    %26 = vector.extract_strided_slice %5 {offsets = [4, 0], sizes = [4, 512], strides = [1, 1]} : vector<36x512xf32> to vector<4x512xf32>
    %c0_9 = arith.constant 0 : index
    %c0_10 = arith.constant 0 : index
    %27 = vector.load %arg3[%c0_9, %c0_10] : memref<128x512xf32, #tpu.memory_space<vmem>>, vector<128x512xf32>
    %cst_11 = arith.constant dense<0.000000e+00> : vector<4x512xf32>
    %28 = tpu.matmul %25, %27, %cst_11 {dimension_numbers = #tpu.dot_dimension_numbers<[1], [0], [0], [1], [0, 0, 1, 1], [], []>} : vector<4x128xf32>, vector<128x512xf32>, vector<4x512xf32> -> vector<4x512xf32>
    %29 = arith.addf %26, %28 : vector<4x512xf32>
    %30 = arith.negf %29 : vector<4x512xf32>
    %31 = math.exp %30 : vector<4x512xf32>
    %cst_12 = arith.constant 1.000000e+00 : f32
    %32 = vector.broadcast %cst_12 : f32 to vector<4x512xf32>
    %33 = arith.addf %32, %31 : vector<4x512xf32>
    %34 = arith.divf %32, %33 : vector<4x512xf32>
    %35 = vector.extract_strided_slice %34 {offsets = [0, 0], sizes = [4, 128], strides = [1, 1]} : vector<4x512xf32> to vector<4x128xf32>
    %36 = vector.extract_strided_slice %34 {offsets = [0, 128], sizes = [4, 128], strides = [1, 1]} : vector<4x512xf32> to vector<4x128xf32>
    %37 = vector.extract_strided_slice %34 {offsets = [0, 256], sizes = [4, 128], strides = [1, 1]} : vector<4x512xf32> to vector<4x128xf32>
    %cst_13 = arith.constant 2.000000e+00 : f32
    %38 = vector.broadcast %cst_13 : f32 to vector<4x128xf32>
    %39 = arith.mulf %38, %37 : vector<4x128xf32>
    %cst_14 = arith.constant 1.000000e+00 : f32
    %40 = vector.broadcast %cst_14 : f32 to vector<4x128xf32>
    %41 = arith.subf %39, %40 : vector<4x128xf32>
    %42 = vector.extract_strided_slice %34 {offsets = [0, 384], sizes = [4, 128], strides = [1, 1]} : vector<4x512xf32> to vector<4x128xf32>
    %43 = arith.mulf %36, %23 : vector<4x128xf32>
    %44 = arith.mulf %35, %41 : vector<4x128xf32>
    %45 = arith.addf %43, %44 : vector<4x128xf32>
    %46 = math.tanh %45 : vector<4x128xf32>
    %47 = arith.mulf %42, %46 : vector<4x128xf32>
    %48 = vector.extract_strided_slice %47 {offsets = [3, 64], sizes = [1, 64], strides = [1, 1]} : vector<4x128xf32> to vector<1x64xf32>
    %49 = vector.extract_strided_slice %5 {offsets = [8, 0], sizes = [4, 512], strides = [1, 1]} : vector<36x512xf32> to vector<4x512xf32>
    %c0_15 = arith.constant 0 : index
    %c0_16 = arith.constant 0 : index
    %50 = vector.load %arg3[%c0_15, %c0_16] : memref<128x512xf32, #tpu.memory_space<vmem>>, vector<128x512xf32>
    %cst_17 = arith.constant dense<0.000000e+00> : vector<4x512xf32>
    %51 = tpu.matmul %47, %50, %cst_17 {dimension_numbers = #tpu.dot_dimension_numbers<[1], [0], [0], [1], [0, 0, 1, 1], [], []>} : vector<4x128xf32>, vector<128x512xf32>, vector<4x512xf32> -> vector<4x512xf32>
    %52 = arith.addf %49, %51 : vector<4x512xf32>
    %53 = arith.negf %52 : vector<4x512xf32>
    %54 = math.exp %53 : vector<4x512xf32>
    %cst_18 = arith.constant 1.000000e+00 : f32
    %55 = vector.broadcast %cst_18 : f32 to vector<4x512xf32>
    %56 = arith.addf %55, %54 : vector<4x512xf32>
    %57 = arith.divf %55, %56 : vector<4x512xf32>
    %58 = vector.extract_strided_slice %57 {offsets = [0, 0], sizes = [4, 128], strides = [1, 1]} : vector<4x512xf32> to vector<4x128xf32>
    %59 = vector.extract_strided_slice %57 {offsets = [0, 128], sizes = [4, 128], strides = [1, 1]} : vector<4x512xf32> to vector<4x128xf32>
    %60 = vector.extract_strided_slice %57 {offsets = [0, 256], sizes = [4, 128], strides = [1, 1]} : vector<4x512xf32> to vector<4x128xf32>
    %cst_19 = arith.constant 2.000000e+00 : f32
    %61 = vector.broadcast %cst_19 : f32 to vector<4x128xf32>
    %62 = arith.mulf %61, %60 : vector<4x128xf32>
    %cst_20 = arith.constant 1.000000e+00 : f32
    %63 = vector.broadcast %cst_20 : f32 to vector<4x128xf32>
    %64 = arith.subf %62, %63 : vector<4x128xf32>
    %65 = vector.extract_strided_slice %57 {offsets = [0, 384], sizes = [4, 128], strides = [1, 1]} : vector<4x512xf32> to vector<4x128xf32>
    %66 = arith.mulf %59, %45 : vector<4x128xf32>
    %67 = arith.mulf %58, %64 : vector<4x128xf32>
    %68 = arith.addf %66, %67 : vector<4x128xf32>
    %69 = math.tanh %68 : vector<4x128xf32>
    %70 = arith.mulf %65, %69 : vector<4x128xf32>
    %71 = vector.extract_strided_slice %70 {offsets = [3, 64], sizes = [1, 64], strides = [1, 1]} : vector<4x128xf32> to vector<1x64xf32>
    %72 = vector.extract_strided_slice %5 {offsets = [12, 0], sizes = [4, 512], strides = [1, 1]} : vector<36x512xf32> to vector<4x512xf32>
    %c0_21 = arith.constant 0 : index
    %c0_22 = arith.constant 0 : index
    %73 = vector.load %arg3[%c0_21, %c0_22] : memref<128x512xf32, #tpu.memory_space<vmem>>, vector<128x512xf32>
    %cst_23 = arith.constant dense<0.000000e+00> : vector<4x512xf32>
    %74 = tpu.matmul %70, %73, %cst_23 {dimension_numbers = #tpu.dot_dimension_numbers<[1], [0], [0], [1], [0, 0, 1, 1], [], []>} : vector<4x128xf32>, vector<128x512xf32>, vector<4x512xf32> -> vector<4x512xf32>
    %75 = arith.addf %72, %74 : vector<4x512xf32>
    %76 = arith.negf %75 : vector<4x512xf32>
    %77 = math.exp %76 : vector<4x512xf32>
    %cst_24 = arith.constant 1.000000e+00 : f32
    %78 = vector.broadcast %cst_24 : f32 to vector<4x512xf32>
    %79 = arith.addf %78, %77 : vector<4x512xf32>
    %80 = arith.divf %78, %79 : vector<4x512xf32>
    %81 = vector.extract_strided_slice %80 {offsets = [0, 0], sizes = [4, 128], strides = [1, 1]} : vector<4x512xf32> to vector<4x128xf32>
    %82 = vector.extract_strided_slice %80 {offsets = [0, 128], sizes = [4, 128], strides = [1, 1]} : vector<4x512xf32> to vector<4x128xf32>
    %83 = vector.extract_strided_slice %80 {offsets = [0, 256], sizes = [4, 128], strides = [1, 1]} : vector<4x512xf32> to vector<4x128xf32>
    %cst_25 = arith.constant 2.000000e+00 : f32
    %84 = vector.broadcast %cst_25 : f32 to vector<4x128xf32>
    %85 = arith.mulf %84, %83 : vector<4x128xf32>
    %cst_26 = arith.constant 1.000000e+00 : f32
    %86 = vector.broadcast %cst_26 : f32 to vector<4x128xf32>
    %87 = arith.subf %85, %86 : vector<4x128xf32>
    %88 = vector.extract_strided_slice %80 {offsets = [0, 384], sizes = [4, 128], strides = [1, 1]} : vector<4x512xf32> to vector<4x128xf32>
    %89 = arith.mulf %82, %68 : vector<4x128xf32>
    %90 = arith.mulf %81, %87 : vector<4x128xf32>
    %91 = arith.addf %89, %90 : vector<4x128xf32>
    %92 = math.tanh %91 : vector<4x128xf32>
    %93 = arith.mulf %88, %92 : vector<4x128xf32>
    %94 = vector.extract_strided_slice %93 {offsets = [3, 64], sizes = [1, 64], strides = [1, 1]} : vector<4x128xf32> to vector<1x64xf32>
    %95 = vector.extract_strided_slice %5 {offsets = [16, 0], sizes = [4, 512], strides = [1, 1]} : vector<36x512xf32> to vector<4x512xf32>
    %c0_27 = arith.constant 0 : index
    %c0_28 = arith.constant 0 : index
    %96 = vector.load %arg3[%c0_27, %c0_28] : memref<128x512xf32, #tpu.memory_space<vmem>>, vector<128x512xf32>
    %cst_29 = arith.constant dense<0.000000e+00> : vector<4x512xf32>
    %97 = tpu.matmul %93, %96, %cst_29 {dimension_numbers = #tpu.dot_dimension_numbers<[1], [0], [0], [1], [0, 0, 1, 1], [], []>} : vector<4x128xf32>, vector<128x512xf32>, vector<4x512xf32> -> vector<4x512xf32>
    %98 = arith.addf %95, %97 : vector<4x512xf32>
    %99 = arith.negf %98 : vector<4x512xf32>
    %100 = math.exp %99 : vector<4x512xf32>
    %cst_30 = arith.constant 1.000000e+00 : f32
    %101 = vector.broadcast %cst_30 : f32 to vector<4x512xf32>
    %102 = arith.addf %101, %100 : vector<4x512xf32>
    %103 = arith.divf %101, %102 : vector<4x512xf32>
    %104 = vector.extract_strided_slice %103 {offsets = [0, 0], sizes = [4, 128], strides = [1, 1]} : vector<4x512xf32> to vector<4x128xf32>
    %105 = vector.extract_strided_slice %103 {offsets = [0, 128], sizes = [4, 128], strides = [1, 1]} : vector<4x512xf32> to vector<4x128xf32>
    %106 = vector.extract_strided_slice %103 {offsets = [0, 256], sizes = [4, 128], strides = [1, 1]} : vector<4x512xf32> to vector<4x128xf32>
    %cst_31 = arith.constant 2.000000e+00 : f32
    %107 = vector.broadcast %cst_31 : f32 to vector<4x128xf32>
    %108 = arith.mulf %107, %106 : vector<4x128xf32>
    %cst_32 = arith.constant 1.000000e+00 : f32
    %109 = vector.broadcast %cst_32 : f32 to vector<4x128xf32>
    %110 = arith.subf %108, %109 : vector<4x128xf32>
    %111 = vector.extract_strided_slice %103 {offsets = [0, 384], sizes = [4, 128], strides = [1, 1]} : vector<4x512xf32> to vector<4x128xf32>
    %112 = arith.mulf %105, %91 : vector<4x128xf32>
    %113 = arith.mulf %104, %110 : vector<4x128xf32>
    %114 = arith.addf %112, %113 : vector<4x128xf32>
    %115 = math.tanh %114 : vector<4x128xf32>
    %116 = arith.mulf %111, %115 : vector<4x128xf32>
    %117 = vector.extract_strided_slice %116 {offsets = [3, 64], sizes = [1, 64], strides = [1, 1]} : vector<4x128xf32> to vector<1x64xf32>
    %118 = vector.extract_strided_slice %5 {offsets = [20, 0], sizes = [4, 512], strides = [1, 1]} : vector<36x512xf32> to vector<4x512xf32>
    %c0_33 = arith.constant 0 : index
    %c0_34 = arith.constant 0 : index
    %119 = vector.load %arg3[%c0_33, %c0_34] : memref<128x512xf32, #tpu.memory_space<vmem>>, vector<128x512xf32>
    %cst_35 = arith.constant dense<0.000000e+00> : vector<4x512xf32>
    %120 = tpu.matmul %116, %119, %cst_35 {dimension_numbers = #tpu.dot_dimension_numbers<[1], [0], [0], [1], [0, 0, 1, 1], [], []>} : vector<4x128xf32>, vector<128x512xf32>, vector<4x512xf32> -> vector<4x512xf32>
    %121 = arith.addf %118, %120 : vector<4x512xf32>
    %122 = arith.negf %121 : vector<4x512xf32>
    %123 = math.exp %122 : vector<4x512xf32>
    %cst_36 = arith.constant 1.000000e+00 : f32
    %124 = vector.broadcast %cst_36 : f32 to vector<4x512xf32>
    %125 = arith.addf %124, %123 : vector<4x512xf32>
    %126 = arith.divf %124, %125 : vector<4x512xf32>
    %127 = vector.extract_strided_slice %126 {offsets = [0, 0], sizes = [4, 128], strides = [1, 1]} : vector<4x512xf32> to vector<4x128xf32>
    %128 = vector.extract_strided_slice %126 {offsets = [0, 128], sizes = [4, 128], strides = [1, 1]} : vector<4x512xf32> to vector<4x128xf32>
    %129 = vector.extract_strided_slice %126 {offsets = [0, 256], sizes = [4, 128], strides = [1, 1]} : vector<4x512xf32> to vector<4x128xf32>
    %cst_37 = arith.constant 2.000000e+00 : f32
    %130 = vector.broadcast %cst_37 : f32 to vector<4x128xf32>
    %131 = arith.mulf %130, %129 : vector<4x128xf32>
    %cst_38 = arith.constant 1.000000e+00 : f32
    %132 = vector.broadcast %cst_38 : f32 to vector<4x128xf32>
    %133 = arith.subf %131, %132 : vector<4x128xf32>
    %134 = vector.extract_strided_slice %126 {offsets = [0, 384], sizes = [4, 128], strides = [1, 1]} : vector<4x512xf32> to vector<4x128xf32>
    %135 = arith.mulf %128, %114 : vector<4x128xf32>
    %136 = arith.mulf %127, %133 : vector<4x128xf32>
    %137 = arith.addf %135, %136 : vector<4x128xf32>
    %138 = math.tanh %137 : vector<4x128xf32>
    %139 = arith.mulf %134, %138 : vector<4x128xf32>
    %140 = vector.extract_strided_slice %139 {offsets = [3, 64], sizes = [1, 64], strides = [1, 1]} : vector<4x128xf32> to vector<1x64xf32>
    %141 = vector.extract_strided_slice %5 {offsets = [24, 0], sizes = [4, 512], strides = [1, 1]} : vector<36x512xf32> to vector<4x512xf32>
    %c0_39 = arith.constant 0 : index
    %c0_40 = arith.constant 0 : index
    %142 = vector.load %arg3[%c0_39, %c0_40] : memref<128x512xf32, #tpu.memory_space<vmem>>, vector<128x512xf32>
    %cst_41 = arith.constant dense<0.000000e+00> : vector<4x512xf32>
    %143 = tpu.matmul %139, %142, %cst_41 {dimension_numbers = #tpu.dot_dimension_numbers<[1], [0], [0], [1], [0, 0, 1, 1], [], []>} : vector<4x128xf32>, vector<128x512xf32>, vector<4x512xf32> -> vector<4x512xf32>
    %144 = arith.addf %141, %143 : vector<4x512xf32>
    %145 = arith.negf %144 : vector<4x512xf32>
    %146 = math.exp %145 : vector<4x512xf32>
    %cst_42 = arith.constant 1.000000e+00 : f32
    %147 = vector.broadcast %cst_42 : f32 to vector<4x512xf32>
    %148 = arith.addf %147, %146 : vector<4x512xf32>
    %149 = arith.divf %147, %148 : vector<4x512xf32>
    %150 = vector.extract_strided_slice %149 {offsets = [0, 0], sizes = [4, 128], strides = [1, 1]} : vector<4x512xf32> to vector<4x128xf32>
    %151 = vector.extract_strided_slice %149 {offsets = [0, 128], sizes = [4, 128], strides = [1, 1]} : vector<4x512xf32> to vector<4x128xf32>
    %152 = vector.extract_strided_slice %149 {offsets = [0, 256], sizes = [4, 128], strides = [1, 1]} : vector<4x512xf32> to vector<4x128xf32>
    %cst_43 = arith.constant 2.000000e+00 : f32
    %153 = vector.broadcast %cst_43 : f32 to vector<4x128xf32>
    %154 = arith.mulf %153, %152 : vector<4x128xf32>
    %cst_44 = arith.constant 1.000000e+00 : f32
    %155 = vector.broadcast %cst_44 : f32 to vector<4x128xf32>
    %156 = arith.subf %154, %155 : vector<4x128xf32>
    %157 = vector.extract_strided_slice %149 {offsets = [0, 384], sizes = [4, 128], strides = [1, 1]} : vector<4x512xf32> to vector<4x128xf32>
    %158 = arith.mulf %151, %137 : vector<4x128xf32>
    %159 = arith.mulf %150, %156 : vector<4x128xf32>
    %160 = arith.addf %158, %159 : vector<4x128xf32>
    %161 = math.tanh %160 : vector<4x128xf32>
    %162 = arith.mulf %157, %161 : vector<4x128xf32>
    %163 = vector.extract_strided_slice %162 {offsets = [3, 64], sizes = [1, 64], strides = [1, 1]} : vector<4x128xf32> to vector<1x64xf32>
    %164 = vector.extract_strided_slice %5 {offsets = [28, 0], sizes = [4, 512], strides = [1, 1]} : vector<36x512xf32> to vector<4x512xf32>
    %c0_45 = arith.constant 0 : index
    %c0_46 = arith.constant 0 : index
    %165 = vector.load %arg3[%c0_45, %c0_46] : memref<128x512xf32, #tpu.memory_space<vmem>>, vector<128x512xf32>
    %cst_47 = arith.constant dense<0.000000e+00> : vector<4x512xf32>
    %166 = tpu.matmul %162, %165, %cst_47 {dimension_numbers = #tpu.dot_dimension_numbers<[1], [0], [0], [1], [0, 0, 1, 1], [], []>} : vector<4x128xf32>, vector<128x512xf32>, vector<4x512xf32> -> vector<4x512xf32>
    %167 = arith.addf %164, %166 : vector<4x512xf32>
    %168 = arith.negf %167 : vector<4x512xf32>
    %169 = math.exp %168 : vector<4x512xf32>
    %cst_48 = arith.constant 1.000000e+00 : f32
    %170 = vector.broadcast %cst_48 : f32 to vector<4x512xf32>
    %171 = arith.addf %170, %169 : vector<4x512xf32>
    %172 = arith.divf %170, %171 : vector<4x512xf32>
    %173 = vector.extract_strided_slice %172 {offsets = [0, 0], sizes = [4, 128], strides = [1, 1]} : vector<4x512xf32> to vector<4x128xf32>
    %174 = vector.extract_strided_slice %172 {offsets = [0, 128], sizes = [4, 128], strides = [1, 1]} : vector<4x512xf32> to vector<4x128xf32>
    %175 = vector.extract_strided_slice %172 {offsets = [0, 256], sizes = [4, 128], strides = [1, 1]} : vector<4x512xf32> to vector<4x128xf32>
    %cst_49 = arith.constant 2.000000e+00 : f32
    %176 = vector.broadcast %cst_49 : f32 to vector<4x128xf32>
    %177 = arith.mulf %176, %175 : vector<4x128xf32>
    %cst_50 = arith.constant 1.000000e+00 : f32
    %178 = vector.broadcast %cst_50 : f32 to vector<4x128xf32>
    %179 = arith.subf %177, %178 : vector<4x128xf32>
    %180 = vector.extract_strided_slice %172 {offsets = [0, 384], sizes = [4, 128], strides = [1, 1]} : vector<4x512xf32> to vector<4x128xf32>
    %181 = arith.mulf %174, %160 : vector<4x128xf32>
    %182 = arith.mulf %173, %179 : vector<4x128xf32>
    %183 = arith.addf %181, %182 : vector<4x128xf32>
    %184 = math.tanh %183 : vector<4x128xf32>
    %185 = arith.mulf %180, %184 : vector<4x128xf32>
    %186 = vector.extract_strided_slice %185 {offsets = [3, 64], sizes = [1, 64], strides = [1, 1]} : vector<4x128xf32> to vector<1x64xf32>
    %187 = vector.extract_strided_slice %5 {offsets = [32, 0], sizes = [4, 512], strides = [1, 1]} : vector<36x512xf32> to vector<4x512xf32>
    %c0_51 = arith.constant 0 : index
    %c0_52 = arith.constant 0 : index
    %188 = vector.load %arg3[%c0_51, %c0_52] : memref<128x512xf32, #tpu.memory_space<vmem>>, vector<128x512xf32>
    %cst_53 = arith.constant dense<0.000000e+00> : vector<4x512xf32>
    %189 = tpu.matmul %185, %188, %cst_53 {dimension_numbers = #tpu.dot_dimension_numbers<[1], [0], [0], [1], [0, 0, 1, 1], [], []>} : vector<4x128xf32>, vector<128x512xf32>, vector<4x512xf32> -> vector<4x512xf32>
    %190 = arith.addf %187, %189 : vector<4x512xf32>
    %191 = arith.negf %190 : vector<4x512xf32>
    %192 = math.exp %191 : vector<4x512xf32>
    %cst_54 = arith.constant 1.000000e+00 : f32
    %193 = vector.broadcast %cst_54 : f32 to vector<4x512xf32>
    %194 = arith.addf %193, %192 : vector<4x512xf32>
    %195 = arith.divf %193, %194 : vector<4x512xf32>
    %196 = vector.extract_strided_slice %195 {offsets = [0, 0], sizes = [4, 128], strides = [1, 1]} : vector<4x512xf32> to vector<4x128xf32>
    %197 = vector.extract_strided_slice %195 {offsets = [0, 128], sizes = [4, 128], strides = [1, 1]} : vector<4x512xf32> to vector<4x128xf32>
    %198 = vector.extract_strided_slice %195 {offsets = [0, 256], sizes = [4, 128], strides = [1, 1]} : vector<4x512xf32> to vector<4x128xf32>
    %cst_55 = arith.constant 2.000000e+00 : f32
    %199 = vector.broadcast %cst_55 : f32 to vector<4x128xf32>
    %200 = arith.mulf %199, %198 : vector<4x128xf32>
    %cst_56 = arith.constant 1.000000e+00 : f32
    %201 = vector.broadcast %cst_56 : f32 to vector<4x128xf32>
    %202 = arith.subf %200, %201 : vector<4x128xf32>
    %203 = vector.extract_strided_slice %195 {offsets = [0, 384], sizes = [4, 128], strides = [1, 1]} : vector<4x512xf32> to vector<4x128xf32>
    %204 = arith.mulf %197, %183 : vector<4x128xf32>
    %205 = arith.mulf %196, %202 : vector<4x128xf32>
    %206 = arith.addf %204, %205 : vector<4x128xf32>
    %207 = math.tanh %206 : vector<4x128xf32>
    %208 = arith.mulf %203, %207 : vector<4x128xf32>
    %209 = vector.extract_strided_slice %208 {offsets = [3, 64], sizes = [1, 64], strides = [1, 1]} : vector<4x128xf32> to vector<1x64xf32>
    %210 = tpu.concatenate %48, %71, %94, %117, %140, %163, %186, %209 in 0 : vector<1x64xf32>, vector<1x64xf32>, vector<1x64xf32>, vector<1x64xf32>, vector<1x64xf32>, vector<1x64xf32>, vector<1x64xf32>, vector<1x64xf32> -> vector<8x64xf32>
    %c0_57 = arith.constant 0 : index
    %c0_58 = arith.constant 0 : index
    %211 = vector.load %arg4[%c0_57, %c0_58] : memref<64x128xf32, #tpu.memory_space<vmem>>, vector<64x128xf32>
    %cst_59 = arith.constant dense<0.000000e+00> : vector<8x128xf32>
    %212 = tpu.matmul %210, %211, %cst_59 {dimension_numbers = #tpu.dot_dimension_numbers<[1], [0], [0], [1], [0, 0, 1, 1], [], []>} : vector<8x64xf32>, vector<64x128xf32>, vector<8x128xf32> -> vector<8x128xf32>
    %c0_60 = arith.constant 0 : index
    %c0_61 = arith.constant 0 : index
    %213 = vector.load %arg5[%c0_60, %c0_61] : memref<1x128xf32, #tpu.memory_space<vmem>>, vector<1x128xf32>
    %214 = vector.broadcast %213 : vector<1x128xf32> to vector<8x128xf32>
    %215 = arith.addf %212, %214 : vector<8x128xf32>
    %c0_62 = arith.constant 0 : index
    %c0_63 = arith.constant 0 : index
    %216 = vector.load %arg6[%c0_62, %c0_63] : memref<8x128xf32, #tpu.memory_space<vmem>>, vector<8x128xf32>
    tpu.vector_store %arg6[%c0_62, %c0_63], %215 {strides = array<i32>} : memref<8x128xf32, #tpu.memory_space<vmem>>, vector<8x128xf32>,
    return
  }
}

</mosaic_0001>

<llo_original>
// kernel: forward.1
$region0: #{forward.1}
  #allocation0 [shape = 'u32[]', space=smem, size = 0x4, offset = 0x4, fixed_abs, tag = 'smem constant byte address 0x4 - core index']
  #allocation1 [shape = 'u32[144,128]{1,0:T(1,128)}', space=vmem, size = 0x12000, scoped, tag = 'internal scratch']
  %s0 = inlined_call_operand.vmem [shape: f32[36,3], index: 0, kind: input, shape index: {}]
  %s1 = inlined_call_operand.vmem [shape: f32[3,512], index: 1, kind: input, shape index: {}]
  %s2 = inlined_call_operand.vmem [shape: f32[1,512], index: 2, kind: input, shape index: {}]
  %s3 = inlined_call_operand.hbm [shape: f32[128,512], index: 3, kind: input, shape index: {}]
  %s4 = inlined_call_operand.vmem [shape: f32[64,128], index: 4, kind: input, shape index: {}]
  %s5 = inlined_call_operand.vmem [shape: f32[1,128], index: 5, kind: input, shape index: {}]
  %s6 = inlined_call_operand.hbm [shape: f32[8,128], index: 6, kind: output, shape index: {}]
  %s7 = sld [smem:[#allocation0]]
  $region38: #{forward.1} parent=0
    _
  %s9 = ssub.s32 1, %s7
  %s10 = scalar_select 0, %s9, %s7
  $region1: #{forward.1} parent=0
    #allocation2 [shape = 'u8[262144]{0}', space=vmem, size = 0x40000, scoped, tag = 'input window, operand 3, single buffered']
    #allocation3 [shape = 's32[1]{0}', space=sflag, size = 0x4, scoped, tag = 'scoped memory for forward.1']
    #allocation4 [shape = 's32[1]{0}', space=sflag, size = 0x4, scoped, tag = 'scoped memory for forward.1']
    #allocation5 [shape = 'u8[4096]{0}', space=vmem, size = 0x1000, scoped, tag = 'output window, operand 0, single buffered']
    %11 = vsyncpa [#allocation3], 0
    %12 = vsyncpa [#allocation4], 0
    // Predicated region
    $region2: #{forward.1} parent=1 // pred_check
      _
    $region3: #{forward.1} parent=1 // pred_check_branch
      %14 = sbr.rel (0) target = $region5
    $region4: #{forward.1} parent=1 // pred_region
      _
    $region5: #{forward.1} parent=1 // pred_fallthru
      _
    // Predicated region
    $region6: #{forward.1} parent=1 // pred_check
      _
    $region7: #{forward.1} parent=1 // pred_check_branch
      %16 = sbr.rel (0) target = $region9
    $region8: #{forward.1} parent=1 // pred_region
      _
    $region9: #{forward.1} parent=1 // pred_fallthru
      _
    // Predicated region
    $region10: #{forward.1} parent=1 // pred_check
      _
    $region11: #{forward.1} parent=1 // pred_check_branch
      %18 = sbr.rel (0) target = $region13
    $region12: #{forward.1} parent=1 // pred_region
      _
    $region13: #{forward.1} parent=1 // pred_fallthru
      _
    // Predicated region
    $region14: #{forward.1} parent=1 // pred_check
      _
    $region15: #{forward.1} parent=1 // pred_check_branch
      %20 = sbr.rel (0) target = $region17
    $region16: #{forward.1} parent=1 // pred_region
      %s22 = ssub.s32 8192, 8192
      %23 = vsyncadd [#allocation3], %s22
      %s24 = sshll.u32 [#allocation2], 4
      %s25 = int_to_ptr.vmem [resolvable:$true] %s24
      %30 = dma.hbm_to_vmem [thread:$0]  %s3, 8192, %s25, [#allocation3], 512, 512, 32
    $region17: #{forward.1} parent=1 // pred_fallthru
      _
    // Predicated region
    $region18: #{forward.1} parent=1 // pred_check
      _
    $region19: #{forward.1} parent=1 // pred_check_branch
      %32 = sbr.rel (0) target = $region21
    $region20: #{forward.1} parent=1 // pred_region
      _
    $region21: #{forward.1} parent=1 // pred_fallthru
      _
    // Predicated region
    $region22: #{forward.1} parent=1 // pred_check
      _
    $region23: #{forward.1} parent=1 // pred_check_branch
      %34 = sbr.rel (0) target = $region25
    $region24: #{forward.1} parent=1 // pred_region
      _
    $region25: #{forward.1} parent=1 // pred_fallthru
      _
    // Predicated region
    $region26: #{forward.1} parent=1 // pred_check
      _
    $region27: #{forward.1} parent=1 // pred_check_branch
      %36 = sbr.rel (0) target = $region29
    $region28: #{forward.1} parent=1 // pred_region
      %37 = dma.done [#allocation3], 8192
    $region29: #{forward.1} parent=1 // pred_fallthru
      _
    %v38 = vld [vmem:[%s0] sm:$0xff]
    %v39 = vld [vmem:[%s0 + $0x8] sm:$0xff]
    %v40 = vld [vmem:[%s0 + $0x10] sm:$0xff]
    %v41 = vld [vmem:[%s0 + $0x18] sm:$0xff]
    %v42 = vld [vmem:[%s0 + $0x20] sm:$0xf]
    %v43 = vld [vmem:[%s1] sm:$0x77]
    %v44 = vld [vmem:[%s1 + $0x8] sm:$0x77]
    %v45 = vld [vmem:[%s2] sm:$0xf]
    %v47 = vlaneseq
    %v48 = vshrl.u32 %v47, 7
    %v49 = vsub.s32 0, %v48
    %v50 = vrot.slane %v45, %v49
    %v51 = vlaneseq
    %v52 = vshrl.u32 %v51, 7
    %v53 = vsub.s32 1, %v52
    %v54 = vrot.slane %v45, %v53
    %v55 = vlaneseq
    %v56 = vshrl.u32 %v55, 7
    %v57 = vsub.s32 2, %v56
    %v58 = vrot.slane %v45, %v57
    %v59 = vlaneseq
    %v60 = vshrl.u32 %v59, 7
    %v61 = vsub.s32 3, %v60
    %v62 = vrot.slane %v45, %v61
    %v69 = vcombine.high %v43, %v43
    %v70 = vcombine.high %v44, %v44
    %vm71 = vcmask 23552
    %v73 = vsel %vm71, %v38, 0
    %v76 = vsel %vm71, %v39, 0
    %v79 = vsel %vm71, %v40, 0
    %v82 = vsel %vm71, %v41, 0
    %v85 = vsel %vm71, %v42, 0
    %vm87 = vcmask 1042432
    %v88 = vsel %vm87, %v43, 0
    %v90 = vsel %vm87, %v69, 0
    %v92 = vsel %vm87, %v44, 0
    %v94 = vsel %vm87, %v70, 0
    %96 = vmatprep.subr.mxu0 0.0
    %97 = vmatpush1.msra.mxu0 0.0
    %98 = vmatprep.subr.mxu0 0.0
    %99 = vmatpush1.msra.mxu0 0.0
    %100 = vmatprep.subr.mxu0 0.0
    %101 = vmatpush1.msra.mxu0 0.0
    %102 = vmatprep.subr.mxu0 0.0
    %103 = vmatpush1.msra.mxu0 0.0
    %104 = vmatprep.subr.mxu0 0.0
    %105 = vmatpush1.msra.mxu0 0.0
    %106 = vmatprep.subr.mxu0 0.0
    %107 = vmatpush1.msra.mxu0 0.0
    %108 = vmatprep.subr.mxu0 0.0
    %109 = vmatpush1.msra.mxu0 0.0
    %110 = vmatprep.subr.mxu0 0.0
    %111 = vmatpush1.msra.mxu0 0.0
    %112 = vmatprep.subr.mxu0 0.0
    %113 = vmatpush1.msra.mxu0 0.0
    %114 = vmatprep.subr.mxu0 0.0
    %115 = vmatpush1.msra.mxu0 0.0
    %116 = vmatprep.subr.mxu0 0.0
    %117 = vmatpush1.msra.mxu0 0.0
    %118 = vmatprep.subr.mxu0 0.0
    %119 = vmatpush1.msra.mxu0 0.0
    %120 = vmatprep.subr.mxu0 0.0
    %121 = vmatpush1.msra.mxu0 0.0
    %122 = vmatprep.subr.mxu0 0.0
    %123 = vmatpush1.msra.mxu0 0.0
    %124 = vmatprep.subr.mxu0 0.0
    %125 = vmatpush1.msra.mxu0 0.0
    %126 = vmatprep.subr.mxu0 %v90
    %127 = vmatpush1.msra.mxu0 %v88
    %128 = vmatprep.subr.mxu0 0.0
    %129 = vmatpush2.msra.mxu0 0.0
    %130 = vmatprep.subr.mxu0 0.0
    %131 = vmatpush2.msra.mxu0 0.0
    %132 = vmatprep.subr.mxu0 0.0
    %133 = vmatpush2.msra.mxu0 0.0
    %134 = vmatprep.subr.mxu0 0.0
    %135 = vmatpush2.msra.mxu0 0.0
    %136 = vmatprep.subr.mxu0 0.0
    %137 = vmatpush2.msra.mxu0 0.0
    %138 = vmatprep.subr.mxu0 0.0
    %139 = vmatpush2.msra.mxu0 0.0
    %140 = vmatprep.subr.mxu0 0.0
    %141 = vmatpush2.msra.mxu0 0.0
    %142 = vmatprep.subr.mxu0 0.0
    %143 = vmatpush2.msra.mxu0 0.0
    %144 = vmatprep.subr.mxu0 0.0
    %145 = vmatpush2.msra.mxu0 0.0
    %146 = vmatprep.subr.mxu0 0.0
    %147 = vmatpush2.msra.mxu0 0.0
    %148 = vmatprep.subr.mxu0 0.0
    %149 = vmatpush2.msra.mxu0 0.0
    %150 = vmatprep.subr.mxu0 0.0
    %151 = vmatpush2.msra.mxu0 0.0
    %152 = vmatprep.subr.mxu0 0.0
    %153 = vmatpush2.msra.mxu0 0.0
    %154 = vmatprep.subr.mxu0 0.0
    %155 = vmatpush2.msra.mxu0 0.0
    %156 = vmatprep.subr.mxu0 0.0
    %157 = vmatpush2.msra.mxu0 0.0
    %158 = vmatprep.subr.mxu0 0.0
    %159 = vmatpush2.msra.mxu0 0.0
    %160 = vmatprep.mubr.f32.mxu0 0.0
    %161 = vmatmul.mubr.f32.gmra.mxu0 %v73
    %v162 = vpop.f32.mrf.mxu0
    %v163 = vadd.f32 %v50, %v162
    %v164 = vpop.f32.mrf.mxu0
    %v165 = vadd.f32 %v54, %v164
    %166 = vmatprep.mubr.f32.mxu0 0.0
    %167 = vmatmul.mubr.f32.gmra.mxu0 %v76
    %v168 = vpop.f32.mrf.mxu0
    %v169 = vadd.f32 %v50, %v168
    %v170 = vpop.f32.mrf.mxu0
    %v171 = vadd.f32 %v54, %v170
    %172 = vmatprep.mubr.f32.mxu0 0.0
    %173 = vmatmul.mubr.f32.gmra.mxu0 %v79
    %v174 = vpop.f32.mrf.mxu0
    %v175 = vadd.f32 %v50, %v174
    %v176 = vpop.f32.mrf.mxu0
    %v177 = vadd.f32 %v54, %v176
    %178 = vmatprep.mubr.f32.mxu0 0.0
    %179 = vmatmul.mubr.f32.gmra.mxu0 %v82
    %v180 = vpop.f32.mrf.mxu0
    %v181 = vadd.f32 %v50, %v180
    %v182 = vpop.f32.mrf.mxu0
    %v183 = vadd.f32 %v54, %v182
    %184 = vmatprep.mubr.f32.mxu0 0.0
    %185 = vmatmul.mubr.f32.gmra.mxu0 %v85
    %v186 = vpop.f32.mrf.mxu0
    %v187 = vadd.f32 %v50, %v186
    %v188 = vpop.f32.mrf.mxu0
    %v189 = vadd.f32 %v54, %v188
    %190 = vdwg.mxu0
    %191 = vmatprep.subr.mxu0 0.0
    %192 = vmatpush1.msra.mxu0 0.0
    %193 = vmatprep.subr.mxu0 0.0
    %194 = vmatpush1.msra.mxu0 0.0
    %195 = vmatprep.subr.mxu0 0.0
    %196 = vmatpush1.msra.mxu0 0.0
    %197 = vmatprep.subr.mxu0 0.0
    %198 = vmatpush1.msra.mxu0 0.0
    %199 = vmatprep.subr.mxu0 0.0
    %200 = vmatpush1.msra.mxu0 0.0
    %201 = vmatprep.subr.mxu0 0.0
    %202 = vmatpush1.msra.mxu0 0.0
    %203 = vmatprep.subr.mxu0 0.0
    %204 = vmatpush1.msra.mxu0 0.0
    %205 = vmatprep.subr.mxu0 0.0
    %206 = vmatpush1.msra.mxu0 0.0
    %207 = vmatprep.subr.mxu0 0.0
    %208 = vmatpush1.msra.mxu0 0.0
    %209 = vmatprep.subr.mxu0 0.0
    %210 = vmatpush1.msra.mxu0 0.0
    %211 = vmatprep.subr.mxu0 0.0
    %212 = vmatpush1.msra.mxu0 0.0
    %213 = vmatprep.subr.mxu0 0.0
    %214 = vmatpush1.msra.mxu0 0.0
    %215 = vmatprep.subr.mxu0 0.0
    %216 = vmatpush1.msra.mxu0 0.0
    %217 = vmatprep.subr.mxu0 0.0
    %218 = vmatpush1.msra.mxu0 0.0
    %219 = vmatprep.subr.mxu0 0.0
    %220 = vmatpush1.msra.mxu0 0.0
    %221 = vmatprep.subr.mxu0 %v94
    %222 = vmatpush1.msra.mxu0 %v92
    %223 = vmatprep.subr.mxu0 0.0
    %224 = vmatpush2.msra.mxu0 0.0
    %225 = vmatprep.subr.mxu0 0.0
    %226 = vmatpush2.msra.mxu0 0.0
    %227 = vmatprep.subr.mxu0 0.0
    %228 = vmatpush2.msra.mxu0 0.0
    %229 = vmatprep.subr.mxu0 0.0
    %230 = vmatpush2.msra.mxu0 0.0
    %231 = vmatprep.subr.mxu0 0.0
    %232 = vmatpush2.msra.mxu0 0.0
    %233 = vmatprep.subr.mxu0 0.0
    %234 = vmatpush2.msra.mxu0 0.0
    %235 = vmatprep.subr.mxu0 0.0
    %236 = vmatpush2.msra.mxu0 0.0
    %237 = vmatprep.subr.mxu0 0.0
    %238 = vmatpush2.msra.mxu0 0.0
    %239 = vmatprep.subr.mxu0 0.0
    %240 = vmatpush2.msra.mxu0 0.0
    %241 = vmatprep.subr.mxu0 0.0
    %242 = vmatpush2.msra.mxu0 0.0
    %243 = vmatprep.subr.mxu0 0.0
    %244 = vmatpush2.msra.mxu0 0.0
    %245 = vmatprep.subr.mxu0 0.0
    %246 = vmatpush2.msra.mxu0 0.0
    %247 = vmatprep.subr.mxu0 0.0
    %248 = vmatpush2.msra.mxu0 0.0
    %249 = vmatprep.subr.mxu0 0.0
    %250 = vmatpush2.msra.mxu0 0.0
    %251 = vmatprep.subr.mxu0 0.0
    %252 = vmatpush2.msra.mxu0 0.0
    %253 = vmatprep.subr.mxu0 0.0
    %254 = vmatpush2.msra.mxu0 0.0
    %255 = vmatprep.mubr.f32.mxu0 0.0
    %256 = vmatmul.mubr.f32.gmra.mxu0 %v73
    %v257 = vpop.f32.mrf.mxu0
    %v258 = vadd.f32 %v58, %v257
    %v259 = vpop.f32.mrf.mxu0
    %v260 = vadd.f32 %v62, %v259
    %261 = vmatprep.mubr.f32.mxu0 0.0
    %262 = vmatmul.mubr.f32.gmra.mxu0 %v76
    %v263 = vpop.f32.mrf.mxu0
    %v264 = vadd.f32 %v58, %v263
    %v265 = vpop.f32.mrf.mxu0
    %v266 = vadd.f32 %v62, %v265
    %267 = vmatprep.mubr.f32.mxu0 0.0
    %268 = vmatmul.mubr.f32.gmra.mxu0 %v79
    %v269 = vpop.f32.mrf.mxu0
    %v270 = vadd.f32 %v58, %v269
    %v271 = vpop.f32.mrf.mxu0
    %v272 = vadd.f32 %v62, %v271
    %273 = vmatprep.mubr.f32.mxu0 0.0
    %274 = vmatmul.mubr.f32.gmra.mxu0 %v82
    %v275 = vpop.f32.mrf.mxu0
    %v276 = vadd.f32 %v58, %v275
    %v277 = vpop.f32.mrf.mxu0
    %v278 = vadd.f32 %v62, %v277
    %279 = vmatprep.mubr.f32.mxu0 0.0
    %280 = vmatmul.mubr.f32.gmra.mxu0 %v85
    %v281 = vpop.f32.mrf.mxu0
    %v282 = vadd.f32 %v58, %v281
    %v283 = vpop.f32.mrf.mxu0
    %v284 = vadd.f32 %v62, %v283
    %285 = vdwg.mxu0
    %v286 = vxor.u32 %v163, 2147483648
    %v287 = vxor.u32 %v165, 2147483648
    %v288 = vxor.u32 %v258, 2147483648
    %v289 = vxor.u32 %v260, 2147483648
    %v290 = vmul.f32 %v286, 1.442695
    %v291 = vpow.pop %v290
    %v292 = vmul.f32 %v287, 1.442695
    %v293 = vpow.pop %v292
    %v294 = vmul.f32 %v288, 1.442695
    %v295 = vpow.pop %v294
    %v296 = vmul.f32 %v289, 1.442695
    %v297 = vpow.pop %v296
    %v298 = vadd.f32 %v291, 1.0
    %v299 = vadd.f32 %v293, 1.0
    %v300 = vadd.f32 %v295, 1.0
    %v301 = vadd.f32 %v297, 1.0
    %v302 = vrcp.pop %v298
    %v303 = vmul.f32 1.0, %v302
    %v304 = vrcp.pop %v299
    %v305 = vmul.f32 1.0, %v304
    %v306 = vrcp.pop %v300
    %v307 = vmul.f32 1.0, %v306
    %v308 = vrcp.pop %v301
    %v309 = vmul.f32 1.0, %v308
    %v310 = vmul.f32 %v307, 2.0
    %v311 = vsub.f32 %v310, 1.0
    %v312 = vmul.f32 %v305, 0.0
    %v313 = vmul.f32 %v303, %v311
    %v314 = vadd.f32 %v312, %v313
    %v315 = vtanh.pop %v314
    %v316 = vmul.f32 %v309, %v315
    %v317 = vld [vmem:[#allocation2] sm:$0xff]
    %v318 = vld [vmem:[#allocation2 + $0x8] sm:$0xff]
    %v319 = vld [vmem:[#allocation2 + $0x10] sm:$0xff]
    %v320 = vld [vmem:[#allocation2 + $0x18] sm:$0xff]
    %v321 = vld [vmem:[#allocation2 + $0x20] sm:$0xff]
    %v322 = vld [vmem:[#allocation2 + $0x28] sm:$0xff]
    %v323 = vld [vmem:[#allocation2 + $0x30] sm:$0xff]
    %v324 = vld [vmem:[#allocation2 + $0x38] sm:$0xff]
    %v325 = vld [vmem:[#allocation2 + $0x40] sm:$0xff]
    %v326 = vld [vmem:[#allocation2 + $0x48] sm:$0xff]
    %v327 = vld [vmem:[#allocation2 + $0x50] sm:$0xff]
    %v328 = vld [vmem:[#allocation2 + $0x58] sm:$0xff]
    %v329 = vld [vmem:[#allocation2 + $0x60] sm:$0xff]
    %v330 = vld [vmem:[#allocation2 + $0x68] sm:$0xff]
    %v331 = vld [vmem:[#allocation2 + $0x70] sm:$0xff]
    %v332 = vld [vmem:[#allocation2 + $0x78] sm:$0xff]
    %v333 = vld [vmem:[#allocation2 + $0x80] sm:$0xff]
    %v334 = vld [vmem:[#allocation2 + $0x88] sm:$0xff]
    %v335 = vld [vmem:[#allocation2 + $0x90] sm:$0xff]
    %v336 = vld [vmem:[#allocation2 + $0x98] sm:$0xff]
    %v337 = vld [vmem:[#allocation2 + $0xa0] sm:$0xff]
    %v338 = vld [vmem:[#allocation2 + $0xa8] sm:$0xff]
    %v339 = vld [vmem:[#allocation2 + $0xb0] sm:$0xff]
    %v340 = vld [vmem:[#allocation2 + $0xb8] sm:$0xff]
    %v341 = vld [vmem:[#allocation2 + $0xc0] sm:$0xff]
    %v342 = vld [vmem:[#allocation2 + $0xc8] sm:$0xff]
    %v343 = vld [vmem:[#allocation2 + $0xd0] sm:$0xff]
    %v344 = vld [vmem:[#allocation2 + $0xd8] sm:$0xff]
    %v345 = vld [vmem:[#allocation2 + $0xe0] sm:$0xff]
    %v346 = vld [vmem:[#allocation2 + $0xe8] sm:$0xff]
    %v347 = vld [vmem:[#allocation2 + $0xf0] sm:$0xff]
    %v348 = vld [vmem:[#allocation2 + $0xf8] sm:$0xff]
    %v349 = vld [vmem:[#allocation2 + $0x100] sm:$0xff]
    %v350 = vld [vmem:[#allocation2 + $0x108] sm:$0xff]
    %v351 = vld [vmem:[#allocation2 + $0x110] sm:$0xff]
    %v352 = vld [vmem:[#allocation2 + $0x118] sm:$0xff]
    %v353 = vld [vmem:[#allocation2 + $0x120] sm:$0xff]
    %v354 = vld [vmem:[#allocation2 + $0x128] sm:$0xff]
    %v355 = vld [vmem:[#allocation2 + $0x130] sm:$0xff]
    %v356 = vld [vmem:[#allocation2 + $0x138] sm:$0xff]
    %v357 = vld [vmem:[#allocation2 + $0x140] sm:$0xff]
    %v358 = vld [vmem:[#allocation2 + $0x148] sm:$0xff]
    %v359 = vld [vmem:[#allocation2 + $0x150] sm:$0xff]
    %v360 = vld [vmem:[#allocation2 + $0x158] sm:$0xff]
    %v361 = vld [vmem:[#allocation2 + $0x160] sm:$0xff]
    %v362 = vld [vmem:[#allocation2 + $0x168] sm:$0xff]
    %v363 = vld [vmem:[#allocation2 + $0x170] sm:$0xff]
    %v364 = vld [vmem:[#allocation2 + $0x178] sm:$0xff]
    %v365 = vld [vmem:[#allocation2 + $0x180] sm:$0xff]
    %v366 = vld [vmem:[#allocation2 + $0x188] sm:$0xff]
    %v367 = vld [vmem:[#allocation2 + $0x190] sm:$0xff]
    %v368 = vld [vmem:[#allocation2 + $0x198] sm:$0xff]
    %v369 = vld [vmem:[#allocation2 + $0x1a0] sm:$0xff]
    %v370 = vld [vmem:[#allocation2 + $0x1a8] sm:$0xff]
    %v371 = vld [vmem:[#allocation2 + $0x1b0] sm:$0xff]
    %v372 = vld [vmem:[#allocation2 + $0x1b8] sm:$0xff]
    %v373 = vld [vmem:[#allocation2 + $0x1c0] sm:$0xff]
    %v374 = vld [vmem:[#allocation2 + $0x1c8] sm:$0xff]
    %v375 = vld [vmem:[#allocation2 + $0x1d0] sm:$0xff]
    %v376 = vld [vmem:[#allocation2 + $0x1d8] sm:$0xff]
    %v377 = vld [vmem:[#allocation2 + $0x1e0] sm:$0xff]
    %v378 = vld [vmem:[#allocation2 + $0x1e8] sm:$0xff]
    %v379 = vld [vmem:[#allocation2 + $0x1f0] sm:$0xff]
    %v380 = vld [vmem:[#allocation2 + $0x1f8] sm:$0xff]
    %381 = vmatprep.subr.mxu0 %v378
    %382 = vmatpush1.msra.mxu0 %v377
    %383 = vmatprep.subr.mxu0 %v374
    %384 = vmatpush1.msra.mxu0 %v373
    %385 = vmatprep.subr.mxu0 %v370
    %386 = vmatpush1.msra.mxu0 %v369
    %387 = vmatprep.subr.mxu0 %v366
    %388 = vmatpush1.msra.mxu0 %v365
    %389 = vmatprep.subr.mxu0 %v362
    %390 = vmatpush1.msra.mxu0 %v361
    %391 = vmatprep.subr.mxu0 %v358
    %392 = vmatpush1.msra.mxu0 %v357
    %393 = vmatprep.subr.mxu0 %v354
    %394 = vmatpush1.msra.mxu0 %v353
    %395 = vmatprep.subr.mxu0 %v350
    %396 = vmatpush1.msra.mxu0 %v349
    %397 = vmatprep.subr.mxu0 %v346
    %398 = vmatpush1.msra.mxu0 %v345
    %399 = vmatprep.subr.mxu0 %v342
    %400 = vmatpush1.msra.mxu0 %v341
    %401 = vmatprep.subr.mxu0 %v338
    %402 = vmatpush1.msra.mxu0 %v337
    %403 = vmatprep.subr.mxu0 %v334
    %404 = vmatpush1.msra.mxu0 %v333
    %405 = vmatprep.subr.mxu0 %v330
    %406 = vmatpush1.msra.mxu0 %v329
    %407 = vmatprep.subr.mxu0 %v326
    %408 = vmatpush1.msra.mxu0 %v325
    %409 = vmatprep.subr.mxu0 %v322
    %410 = vmatpush1.msra.mxu0 %v321
    %411 = vmatprep.subr.mxu0 %v318
    %412 = vmatpush1.msra.mxu0 %v317
    %413 = vmatprep.subr.mxu0 0.0
    %414 = vmatpush2.msra.mxu0 0.0
    %415 = vmatprep.subr.mxu0 0.0
    %416 = vmatpush2.msra.mxu0 0.0
    %417 = vmatprep.subr.mxu0 0.0
    %418 = vmatpush2.msra.mxu0 0.0
    %419 = vmatprep.subr.mxu0 0.0
    %420 = vmatpush2.msra.mxu0 0.0
    %421 = vmatprep.subr.mxu0 0.0
    %422 = vmatpush2.msra.mxu0 0.0
    %423 = vmatprep.subr.mxu0 0.0
    %424 = vmatpush2.msra.mxu0 0.0
    %425 = vmatprep.subr.mxu0 0.0
    %426 = vmatpush2.msra.mxu0 0.0
    %427 = vmatprep.subr.mxu0 0.0
    %428 = vmatpush2.msra.mxu0 0.0
    %429 = vmatprep.subr.mxu0 0.0
    %430 = vmatpush2.msra.mxu0 0.0
    %431 = vmatprep.subr.mxu0 0.0
    %432 = vmatpush2.msra.mxu0 0.0
    %433 = vmatprep.subr.mxu0 0.0
    %434 = vmatpush2.msra.mxu0 0.0
    %435 = vmatprep.subr.mxu0 0.0
    %436 = vmatpush2.msra.mxu0 0.0
    %437 = vmatprep.subr.mxu0 0.0
    %438 = vmatpush2.msra.mxu0 0.0
    %439 = vmatprep.subr.mxu0 0.0
    %440 = vmatpush2.msra.mxu0 0.0
    %441 = vmatprep.subr.mxu0 0.0
    %442 = vmatpush2.msra.mxu0 0.0
    %443 = vmatprep.subr.mxu0 0.0
    %444 = vmatpush2.msra.mxu0 0.0
    %445 = vmatprep.mubr.f32.mxu0 0.0
    %446 = vmatmul.mubr.f32.gmra.mxu0 %v316
    %v447 = vpop.f32.mrf.mxu0
    %v448 = vadd.f32 0.0, %v447
    %v449 = vpop.f32.mrf.mxu0
    %v450 = vadd.f32 0.0, %v449
    %451 = vdwg.mxu0
    %452 = vmatprep.subr.mxu0 %v380
    %453 = vmatpush1.msra.mxu0 %v379
    %454 = vmatprep.subr.mxu0 %v376
    %455 = vmatpush1.msra.mxu0 %v375
    %456 = vmatprep.subr.mxu0 %v372
    %457 = vmatpush1.msra.mxu0 %v371
    %458 = vmatprep.subr.mxu0 %v368
    %459 = vmatpush1.msra.mxu0 %v367
    %460 = vmatprep.subr.mxu0 %v364
    %461 = vmatpush1.msra.mxu0 %v363
    %462 = vmatprep.subr.mxu0 %v360
    %463 = vmatpush1.msra.mxu0 %v359
    %464 = vmatprep.subr.mxu0 %v356
    %465 = vmatpush1.msra.mxu0 %v355
    %466 = vmatprep.subr.mxu0 %v352
    %467 = vmatpush1.msra.mxu0 %v351
    %468 = vmatprep.subr.mxu0 %v348
    %469 = vmatpush1.msra.mxu0 %v347
    %470 = vmatprep.subr.mxu0 %v344
    %471 = vmatpush1.msra.mxu0 %v343
    %472 = vmatprep.subr.mxu0 %v340
    %473 = vmatpush1.msra.mxu0 %v339
    %474 = vmatprep.subr.mxu0 %v336
    %475 = vmatpush1.msra.mxu0 %v335
    %476 = vmatprep.subr.mxu0 %v332
    %477 = vmatpush1.msra.mxu0 %v331
    %478 = vmatprep.subr.mxu0 %v328
    %479 = vmatpush1.msra.mxu0 %v327
    %480 = vmatprep.subr.mxu0 %v324
    %481 = vmatpush1.msra.mxu0 %v323
    %482 = vmatprep.subr.mxu0 %v320
    %483 = vmatpush1.msra.mxu0 %v319
    %484 = vmatprep.subr.mxu0 0.0
    %485 = vmatpush2.msra.mxu0 0.0
    %486 = vmatprep.subr.mxu0 0.0
    %487 = vmatpush2.msra.mxu0 0.0
    %488 = vmatprep.subr.mxu0 0.0
    %489 = vmatpush2.msra.mxu0 0.0
    %490 = vmatprep.subr.mxu0 0.0
    %491 = vmatpush2.msra.mxu0 0.0
    %492 = vmatprep.subr.mxu0 0.0
    %493 = vmatpush2.msra.mxu0 0.0
    %494 = vmatprep.subr.mxu0 0.0
    %495 = vmatpush2.msra.mxu0 0.0
    %496 = vmatprep.subr.mxu0 0.0
    %497 = vmatpush2.msra.mxu0 0.0
    %498 = vmatprep.subr.mxu0 0.0
    %499 = vmatpush2.msra.mxu0 0.0
    %500 = vmatprep.subr.mxu0 0.0
    %501 = vmatpush2.msra.mxu0 0.0
    %502 = vmatprep.subr.mxu0 0.0
    %503 = vmatpush2.msra.mxu0 0.0
    %504 = vmatprep.subr.mxu0 0.0
    %505 = vmatpush2.msra.mxu0 0.0
    %506 = vmatprep.subr.mxu0 0.0
    %507 = vmatpush2.msra.mxu0 0.0
    %508 = vmatprep.subr.mxu0 0.0
    %509 = vmatpush2.msra.mxu0 0.0
    %510 = vmatprep.subr.mxu0 0.0
    %511 = vmatpush2.msra.mxu0 0.0
    %512 = vmatprep.subr.mxu0 0.0
    %513 = vmatpush2.msra.mxu0 0.0
    %514 = vmatprep.subr.mxu0 0.0
    %515 = vmatpush2.msra.mxu0 0.0
    %516 = vmatprep.mubr.f32.mxu0 0.0
    %517 = vmatmul.mubr.f32.gmra.mxu0 %v316
    %v518 = vpop.f32.mrf.mxu0
    %v519 = vadd.f32 0.0, %v518
    %v520 = vpop.f32.mrf.mxu0
    %v521 = vadd.f32 0.0, %v520
    %522 = vdwg.mxu0
    %v527 = vrot.slane %v448, 4
    %v528 = vrot.slane %v450, 4
    %v529 = vrot.slane %v519, 4
    %v530 = vrot.slane %v521, 4
    %v535 = vadd.f32 %v163, %v527
    %v536 = vadd.f32 %v165, %v528
    %v537 = vadd.f32 %v258, %v529
    %v538 = vadd.f32 %v260, %v530
    %v539 = vxor.u32 %v535, 2147483648
    %v540 = vxor.u32 %v536, 2147483648
    %v541 = vxor.u32 %v537, 2147483648
    %v542 = vxor.u32 %v538, 2147483648
    %v543 = vmul.f32 %v539, 1.442695
    %v544 = vpow.pop %v543
    %v545 = vmul.f32 %v540, 1.442695
    %v546 = vpow.pop %v545
    %v547 = vmul.f32 %v541, 1.442695
    %v548 = vpow.pop %v547
    %v549 = vmul.f32 %v542, 1.442695
    %v550 = vpow.pop %v549
    %v551 = vadd.f32 %v544, 1.0
    %v552 = vadd.f32 %v546, 1.0
    %v553 = vadd.f32 %v548, 1.0
    %v554 = vadd.f32 %v550, 1.0
    %v555 = vrcp.pop %v551
    %v556 = vmul.f32 1.0, %v555
    %v557 = vrcp.pop %v552
    %v558 = vmul.f32 1.0, %v557
    %v559 = vrcp.pop %v553
    %v560 = vmul.f32 1.0, %v559
    %v561 = vrcp.pop %v554
    %v562 = vmul.f32 1.0, %v561
    %v563 = vmul.f32 %v560, 2.0
    %v564 = vsub.f32 %v563, 1.0
    %v566 = vrot.slane %v314, 4
    %v568 = vmul.f32 %v558, %v566
    %v569 = vmul.f32 %v556, %v564
    %v570 = vadd.f32 %v568, %v569
    %v571 = vtanh.pop %v570
    %v572 = vmul.f32 %v562, %v571
    %v574 = vrot.slane %v572, 4
    %576 = vmatprep.subr.mxu0 %v378
    %577 = vmatpush1.msra.mxu0 %v377
    %578 = vmatprep.subr.mxu0 %v374
    %579 = vmatpush1.msra.mxu0 %v373
    %580 = vmatprep.subr.mxu0 %v370
    %581 = vmatpush1.msra.mxu0 %v369
    %582 = vmatprep.subr.mxu0 %v366
    %583 = vmatpush1.msra.mxu0 %v365
    %584 = vmatprep.subr.mxu0 %v362
    %585 = vmatpush1.msra.mxu0 %v361
    %586 = vmatprep.subr.mxu0 %v358
    %587 = vmatpush1.msra.mxu0 %v357
    %588 = vmatprep.subr.mxu0 %v354
    %589 = vmatpush1.msra.mxu0 %v353
    %590 = vmatprep.subr.mxu0 %v350
    %591 = vmatpush1.msra.mxu0 %v349
    %592 = vmatprep.subr.mxu0 %v346
    %593 = vmatpush1.msra.mxu0 %v345
    %594 = vmatprep.subr.mxu0 %v342
    %595 = vmatpush1.msra.mxu0 %v341
    %596 = vmatprep.subr.mxu0 %v338
    %597 = vmatpush1.msra.mxu0 %v337
    %598 = vmatprep.subr.mxu0 %v334
    %599 = vmatpush1.msra.mxu0 %v333
    %600 = vmatprep.subr.mxu0 %v330
    %601 = vmatpush1.msra.mxu0 %v329
    %602 = vmatprep.subr.mxu0 %v326
    %603 = vmatpush1.msra.mxu0 %v325
    %604 = vmatprep.subr.mxu0 %v322
    %605 = vmatpush1.msra.mxu0 %v321
    %606 = vmatprep.subr.mxu0 %v318
    %607 = vmatpush1.msra.mxu0 %v317
    %608 = vmatprep.subr.mxu0 0.0
    %609 = vmatpush2.msra.mxu0 0.0
    %610 = vmatprep.subr.mxu0 0.0
    %611 = vmatpush2.msra.mxu0 0.0
    %612 = vmatprep.subr.mxu0 0.0
    %613 = vmatpush2.msra.mxu0 0.0
    %614 = vmatprep.subr.mxu0 0.0
    %615 = vmatpush2.msra.mxu0 0.0
    %616 = vmatprep.subr.mxu0 0.0
    %617 = vmatpush2.msra.mxu0 0.0
    %618 = vmatprep.subr.mxu0 0.0
    %619 = vmatpush2.msra.mxu0 0.0
    %620 = vmatprep.subr.mxu0 0.0
    %621 = vmatpush2.msra.mxu0 0.0
    %622 = vmatprep.subr.mxu0 0.0
    %623 = vmatpush2.msra.mxu0 0.0
    %624 = vmatprep.subr.mxu0 0.0
    %625 = vmatpush2.msra.mxu0 0.0
    %626 = vmatprep.subr.mxu0 0.0
    %627 = vmatpush2.msra.mxu0 0.0
    %628 = vmatprep.subr.mxu0 0.0
    %629 = vmatpush2.msra.mxu0 0.0
    %630 = vmatprep.subr.mxu0 0.0
    %631 = vmatpush2.msra.mxu0 0.0
    %632 = vmatprep.subr.mxu0 0.0
    %633 = vmatpush2.msra.mxu0 0.0
    %634 = vmatprep.subr.mxu0 0.0
    %635 = vmatpush2.msra.mxu0 0.0
    %636 = vmatprep.subr.mxu0 0.0
    %637 = vmatpush2.msra.mxu0 0.0
    %638 = vmatprep.subr.mxu0 0.0
    %639 = vmatpush2.msra.mxu0 0.0
    %640 = vmatprep.mubr.f32.mxu0 0.0
    %641 = vmatmul.mubr.f32.gmra.mxu0 %v574
    %v642 = vpop.f32.mrf.mxu0
    %v643 = vadd.f32 0.0, %v642
    %v644 = vpop.f32.mrf.mxu0
    %v645 = vadd.f32 0.0, %v644
    %646 = vdwg.mxu0
    %647 = vmatprep.subr.mxu0 %v380
    %648 = vmatpush1.msra.mxu0 %v379
    %649 = vmatprep.subr.mxu0 %v376
    %650 = vmatpush1.msra.mxu0 %v375
    %651 = vmatprep.subr.mxu0 %v372
    %652 = vmatpush1.msra.mxu0 %v371
    %653 = vmatprep.subr.mxu0 %v368
    %654 = vmatpush1.msra.mxu0 %v367
    %655 = vmatprep.subr.mxu0 %v364
    %656 = vmatpush1.msra.mxu0 %v363
    %657 = vmatprep.subr.mxu0 %v360
    %658 = vmatpush1.msra.mxu0 %v359
    %659 = vmatprep.subr.mxu0 %v356
    %660 = vmatpush1.msra.mxu0 %v355
    %661 = vmatprep.subr.mxu0 %v352
    %662 = vmatpush1.msra.mxu0 %v351
    %663 = vmatprep.subr.mxu0 %v348
    %664 = vmatpush1.msra.mxu0 %v347
    %665 = vmatprep.subr.mxu0 %v344
    %666 = vmatpush1.msra.mxu0 %v343
    %667 = vmatprep.subr.mxu0 %v340
    %668 = vmatpush1.msra.mxu0 %v339
    %669 = vmatprep.subr.mxu0 %v336
    %670 = vmatpush1.msra.mxu0 %v335
    %671 = vmatprep.subr.mxu0 %v332
    %672 = vmatpush1.msra.mxu0 %v331
    %673 = vmatprep.subr.mxu0 %v328
    %674 = vmatpush1.msra.mxu0 %v327
    %675 = vmatprep.subr.mxu0 %v324
    %676 = vmatpush1.msra.mxu0 %v323
    %677 = vmatprep.subr.mxu0 %v320
    %678 = vmatpush1.msra.mxu0 %v319
    %679 = vmatprep.subr.mxu0 0.0
    %680 = vmatpush2.msra.mxu0 0.0
    %681 = vmatprep.subr.mxu0 0.0
    %682 = vmatpush2.msra.mxu0 0.0
    %683 = vmatprep.subr.mxu0 0.0
    %684 = vmatpush2.msra.mxu0 0.0
    %685 = vmatprep.subr.mxu0 0.0
    %686 = vmatpush2.msra.mxu0 0.0
    %687 = vmatprep.subr.mxu0 0.0
    %688 = vmatpush2.msra.mxu0 0.0
    %689 = vmatprep.subr.mxu0 0.0
    %690 = vmatpush2.msra.mxu0 0.0
    %691 = vmatprep.subr.mxu0 0.0
    %692 = vmatpush2.msra.mxu0 0.0
    %693 = vmatprep.subr.mxu0 0.0
    %694 = vmatpush2.msra.mxu0 0.0
    %695 = vmatprep.subr.mxu0 0.0
    %696 = vmatpush2.msra.mxu0 0.0
    %697 = vmatprep.subr.mxu0 0.0
    %698 = vmatpush2.msra.mxu0 0.0
    %699 = vmatprep.subr.mxu0 0.0
    %700 = vmatpush2.msra.mxu0 0.0
    %701 = vmatprep.subr.mxu0 0.0
    %702 = vmatpush2.msra.mxu0 0.0
    %703 = vmatprep.subr.mxu0 0.0
    %704 = vmatpush2.msra.mxu0 0.0
    %705 = vmatprep.subr.mxu0 0.0
    %706 = vmatpush2.msra.mxu0 0.0
    %707 = vmatprep.subr.mxu0 0.0
    %708 = vmatpush2.msra.mxu0 0.0
    %709 = vmatprep.subr.mxu0 0.0
    %710 = vmatpush2.msra.mxu0 0.0
    %711 = vmatprep.mubr.f32.mxu0 0.0
    %712 = vmatmul.mubr.f32.gmra.mxu0 %v574
    %v713 = vpop.f32.mrf.mxu0
    %v714 = vadd.f32 0.0, %v713
    %v715 = vpop.f32.mrf.mxu0
    %v716 = vadd.f32 0.0, %v715
    %717 = vdwg.mxu0
    %v718 = vadd.f32 %v169, %v643
    %v719 = vadd.f32 %v171, %v645
    %v720 = vadd.f32 %v264, %v714
    %v721 = vadd.f32 %v266, %v716
    %v722 = vxor.u32 %v718, 2147483648
    %v723 = vxor.u32 %v719, 2147483648
    %v724 = vxor.u32 %v720, 2147483648
    %v725 = vxor.u32 %v721, 2147483648
    %v726 = vmul.f32 %v722, 1.442695
    %v727 = vpow.pop %v726
    %v728 = vmul.f32 %v723, 1.442695
    %v729 = vpow.pop %v728
    %v730 = vmul.f32 %v724, 1.442695
    %v731 = vpow.pop %v730
    %v732 = vmul.f32 %v725, 1.442695
    %v733 = vpow.pop %v732
    %v734 = vadd.f32 %v727, 1.0
    %v735 = vadd.f32 %v729, 1.0
    %v736 = vadd.f32 %v731, 1.0
    %v737 = vadd.f32 %v733, 1.0
    %v738 = vrcp.pop %v734
    %v739 = vmul.f32 1.0, %v738
    %v740 = vrcp.pop %v735
    %v741 = vmul.f32 1.0, %v740
    %v742 = vrcp.pop %v736
    %v743 = vmul.f32 1.0, %v742
    %v744 = vrcp.pop %v737
    %v745 = vmul.f32 1.0, %v744
    %v746 = vmul.f32 %v743, 2.0
    %v747 = vsub.f32 %v746, 1.0
    %v749 = vrot.slane %v570, 4
    %v751 = vmul.f32 %v741, %v749
    %v752 = vmul.f32 %v739, %v747
    %v753 = vadd.f32 %v751, %v752
    %v754 = vtanh.pop %v753
    %v755 = vmul.f32 %v745, %v754
    %756 = vmatprep.subr.mxu0 %v378
    %757 = vmatpush1.msra.mxu0 %v377
    %758 = vmatprep.subr.mxu0 %v374
    %759 = vmatpush1.msra.mxu0 %v373
    %760 = vmatprep.subr.mxu0 %v370
    %761 = vmatpush1.msra.mxu0 %v369
    %762 = vmatprep.subr.mxu0 %v366
    %763 = vmatpush1.msra.mxu0 %v365
    %764 = vmatprep.subr.mxu0 %v362
    %765 = vmatpush1.msra.mxu0 %v361
    %766 = vmatprep.subr.mxu0 %v358
    %767 = vmatpush1.msra.mxu0 %v357
    %768 = vmatprep.subr.mxu0 %v354
    %769 = vmatpush1.msra.mxu0 %v353
    %770 = vmatprep.subr.mxu0 %v350
    %771 = vmatpush1.msra.mxu0 %v349
    %772 = vmatprep.subr.mxu0 %v346
    %773 = vmatpush1.msra.mxu0 %v345
    %774 = vmatprep.subr.mxu0 %v342
    %775 = vmatpush1.msra.mxu0 %v341
    %776 = vmatprep.subr.mxu0 %v338
    %777 = vmatpush1.msra.mxu0 %v337
    %778 = vmatprep.subr.mxu0 %v334
    %779 = vmatpush1.msra.mxu0 %v333
    %780 = vmatprep.subr.mxu0 %v330
    %781 = vmatpush1.msra.mxu0 %v329
    %782 = vmatprep.subr.mxu0 %v326
    %783 = vmatpush1.msra.mxu0 %v325
    %784 = vmatprep.subr.mxu0 %v322
    %785 = vmatpush1.msra.mxu0 %v321
    %786 = vmatprep.subr.mxu0 %v318
    %787 = vmatpush1.msra.mxu0 %v317
    %788 = vmatprep.subr.mxu0 0.0
    %789 = vmatpush2.msra.mxu0 0.0
    %790 = vmatprep.subr.mxu0 0.0
    %791 = vmatpush2.msra.mxu0 0.0
    %792 = vmatprep.subr.mxu0 0.0
    %793 = vmatpush2.msra.mxu0 0.0
    %794 = vmatprep.subr.mxu0 0.0
    %795 = vmatpush2.msra.mxu0 0.0
    %796 = vmatprep.subr.mxu0 0.0
    %797 = vmatpush2.msra.mxu0 0.0
    %798 = vmatprep.subr.mxu0 0.0
    %799 = vmatpush2.msra.mxu0 0.0
    %800 = vmatprep.subr.mxu0 0.0
    %801 = vmatpush2.msra.mxu0 0.0
    %802 = vmatprep.subr.mxu0 0.0
    %803 = vmatpush2.msra.mxu0 0.0
    %804 = vmatprep.subr.mxu0 0.0
    %805 = vmatpush2.msra.mxu0 0.0
    %806 = vmatprep.subr.mxu0 0.0
    %807 = vmatpush2.msra.mxu0 0.0
    %808 = vmatprep.subr.mxu0 0.0
    %809 = vmatpush2.msra.mxu0 0.0
    %810 = vmatprep.subr.mxu0 0.0
    %811 = vmatpush2.msra.mxu0 0.0
    %812 = vmatprep.subr.mxu0 0.0
    %813 = vmatpush2.msra.mxu0 0.0
    %814 = vmatprep.subr.mxu0 0.0
    %815 = vmatpush2.msra.mxu0 0.0
    %816 = vmatprep.subr.mxu0 0.0
    %817 = vmatpush2.msra.mxu0 0.0
    %818 = vmatprep.subr.mxu0 0.0
    %819 = vmatpush2.msra.mxu0 0.0
    %820 = vmatprep.mubr.f32.mxu0 0.0
    %821 = vmatmul.mubr.f32.gmra.mxu0 %v755
    %v822 = vpop.f32.mrf.mxu0
    %v823 = vadd.f32 0.0, %v822
    %v824 = vpop.f32.mrf.mxu0
    %v825 = vadd.f32 0.0, %v824
    %826 = vdwg.mxu0
    %827 = vmatprep.subr.mxu0 %v380
    %828 = vmatpush1.msra.mxu0 %v379
    %829 = vmatprep.subr.mxu0 %v376
    %830 = vmatpush1.msra.mxu0 %v375
    %831 = vmatprep.subr.mxu0 %v372
    %832 = vmatpush1.msra.mxu0 %v371
    %833 = vmatprep.subr.mxu0 %v368
    %834 = vmatpush1.msra.mxu0 %v367
    %835 = vmatprep.subr.mxu0 %v364
    %836 = vmatpush1.msra.mxu0 %v363
    %837 = vmatprep.subr.mxu0 %v360
    %838 = vmatpush1.msra.mxu0 %v359
    %839 = vmatprep.subr.mxu0 %v356
    %840 = vmatpush1.msra.mxu0 %v355
    %841 = vmatprep.subr.mxu0 %v352
    %842 = vmatpush1.msra.mxu0 %v351
    %843 = vmatprep.subr.mxu0 %v348
    %844 = vmatpush1.msra.mxu0 %v347
    %845 = vmatprep.subr.mxu0 %v344
    %846 = vmatpush1.msra.mxu0 %v343
    %847 = vmatprep.subr.mxu0 %v340
    %848 = vmatpush1.msra.mxu0 %v339
    %849 = vmatprep.subr.mxu0 %v336
    %850 = vmatpush1.msra.mxu0 %v335
    %851 = vmatprep.subr.mxu0 %v332
    %852 = vmatpush1.msra.mxu0 %v331
    %853 = vmatprep.subr.mxu0 %v328
    %854 = vmatpush1.msra.mxu0 %v327
    %855 = vmatprep.subr.mxu0 %v324
    %856 = vmatpush1.msra.mxu0 %v323
    %857 = vmatprep.subr.mxu0 %v320
    %858 = vmatpush1.msra.mxu0 %v319
    %859 = vmatprep.subr.mxu0 0.0
    %860 = vmatpush2.msra.mxu0 0.0
    %861 = vmatprep.subr.mxu0 0.0
    %862 = vmatpush2.msra.mxu0 0.0
    %863 = vmatprep.subr.mxu0 0.0
    %864 = vmatpush2.msra.mxu0 0.0
    %865 = vmatprep.subr.mxu0 0.0
    %866 = vmatpush2.msra.mxu0 0.0
    %867 = vmatprep.subr.mxu0 0.0
    %868 = vmatpush2.msra.mxu0 0.0
    %869 = vmatprep.subr.mxu0 0.0
    %870 = vmatpush2.msra.mxu0 0.0
    %871 = vmatprep.subr.mxu0 0.0
    %872 = vmatpush2.msra.mxu0 0.0
    %873 = vmatprep.subr.mxu0 0.0
    %874 = vmatpush2.msra.mxu0 0.0
    %875 = vmatprep.subr.mxu0 0.0
    %876 = vmatpush2.msra.mxu0 0.0
    %877 = vmatprep.subr.mxu0 0.0
    %878 = vmatpush2.msra.mxu0 0.0
    %879 = vmatprep.subr.mxu0 0.0
    %880 = vmatpush2.msra.mxu0 0.0
    %881 = vmatprep.subr.mxu0 0.0
    %882 = vmatpush2.msra.mxu0 0.0
    %883 = vmatprep.subr.mxu0 0.0
    %884 = vmatpush2.msra.mxu0 0.0
    %885 = vmatprep.subr.mxu0 0.0
    %886 = vmatpush2.msra.mxu0 0.0
    %887 = vmatprep.subr.mxu0 0.0
    %888 = vmatpush2.msra.mxu0 0.0
    %889 = vmatprep.subr.mxu0 0.0
    %890 = vmatpush2.msra.mxu0 0.0
    %891 = vmatprep.mubr.f32.mxu0 0.0
    %892 = vmatmul.mubr.f32.gmra.mxu0 %v755
    %v893 = vpop.f32.mrf.mxu0
    %v894 = vadd.f32 0.0, %v893
    %v895 = vpop.f32.mrf.mxu0
    %v896 = vadd.f32 0.0, %v895
    %897 = vdwg.mxu0
    %v902 = vrot.slane %v823, 4
    %v903 = vrot.slane %v825, 4
    %v904 = vrot.slane %v894, 4
    %v905 = vrot.slane %v896, 4
    %v910 = vadd.f32 %v169, %v902
    %v911 = vadd.f32 %v171, %v903
    %v912 = vadd.f32 %v264, %v904
    %v913 = vadd.f32 %v266, %v905
    %v914 = vxor.u32 %v910, 2147483648
    %v915 = vxor.u32 %v911, 2147483648
    %v916 = vxor.u32 %v912, 2147483648
    %v917 = vxor.u32 %v913, 2147483648
    %v918 = vmul.f32 %v914, 1.442695
    %v919 = vpow.pop %v918
    %v920 = vmul.f32 %v915, 1.442695
    %v921 = vpow.pop %v920
    %v922 = vmul.f32 %v916, 1.442695
    %v923 = vpow.pop %v922
    %v924 = vmul.f32 %v917, 1.442695
    %v925 = vpow.pop %v924
    %v926 = vadd.f32 %v919, 1.0
    %v927 = vadd.f32 %v921, 1.0
    %v928 = vadd.f32 %v923, 1.0
    %v929 = vadd.f32 %v925, 1.0
    %v930 = vrcp.pop %v926
    %v931 = vmul.f32 1.0, %v930
    %v932 = vrcp.pop %v927
    %v933 = vmul.f32 1.0, %v932
    %v934 = vrcp.pop %v928
    %v935 = vmul.f32 1.0, %v934
    %v936 = vrcp.pop %v929
    %v937 = vmul.f32 1.0, %v936
    %v938 = vmul.f32 %v935, 2.0
    %v939 = vsub.f32 %v938, 1.0
    %v941 = vrot.slane %v753, 4
    %v943 = vmul.f32 %v933, %v941
    %v944 = vmul.f32 %v931, %v939
    %v945 = vadd.f32 %v943, %v944
    %v946 = vtanh.pop %v945
    %v947 = vmul.f32 %v937, %v946
    %v949 = vrot.slane %v947, 4
    %951 = vmatprep.subr.mxu0 %v378
    %952 = vmatpush1.msra.mxu0 %v377
    %953 = vmatprep.subr.mxu0 %v374
    %954 = vmatpush1.msra.mxu0 %v373
    %955 = vmatprep.subr.mxu0 %v370
    %956 = vmatpush1.msra.mxu0 %v369
    %957 = vmatprep.subr.mxu0 %v366
    %958 = vmatpush1.msra.mxu0 %v365
    %959 = vmatprep.subr.mxu0 %v362
    %960 = vmatpush1.msra.mxu0 %v361
    %961 = vmatprep.subr.mxu0 %v358
    %962 = vmatpush1.msra.mxu0 %v357
    %963 = vmatprep.subr.mxu0 %v354
    %964 = vmatpush1.msra.mxu0 %v353
    %965 = vmatprep.subr.mxu0 %v350
    %966 = vmatpush1.msra.mxu0 %v349
    %967 = vmatprep.subr.mxu0 %v346
    %968 = vmatpush1.msra.mxu0 %v345
    %969 = vmatprep.subr.mxu0 %v342
    %970 = vmatpush1.msra.mxu0 %v341
    %971 = vmatprep.subr.mxu0 %v338
    %972 = vmatpush1.msra.mxu0 %v337
    %973 = vmatprep.subr.mxu0 %v334
    %974 = vmatpush1.msra.mxu0 %v333
    %975 = vmatprep.subr.mxu0 %v330
    %976 = vmatpush1.msra.mxu0 %v329
    %977 = vmatprep.subr.mxu0 %v326
    %978 = vmatpush1.msra.mxu0 %v325
    %979 = vmatprep.subr.mxu0 %v322
    %980 = vmatpush1.msra.mxu0 %v321
    %981 = vmatprep.subr.mxu0 %v318
    %982 = vmatpush1.msra.mxu0 %v317
    %983 = vmatprep.subr.mxu0 0.0
    %984 = vmatpush2.msra.mxu0 0.0
    %985 = vmatprep.subr.mxu0 0.0
    %986 = vmatpush2.msra.mxu0 0.0
    %987 = vmatprep.subr.mxu0 0.0
    %988 = vmatpush2.msra.mxu0 0.0
    %989 = vmatprep.subr.mxu0 0.0
    %990 = vmatpush2.msra.mxu0 0.0
    %991 = vmatprep.subr.mxu0 0.0
    %992 = vmatpush2.msra.mxu0 0.0
    %993 = vmatprep.subr.mxu0 0.0
    %994 = vmatpush2.msra.mxu0 0.0
    %995 = vmatprep.subr.mxu0 0.0
    %996 = vmatpush2.msra.mxu0 0.0
    %997 = vmatprep.subr.mxu0 0.0
    %998 = vmatpush2.msra.mxu0 0.0
    %999 = vmatprep.subr.mxu0 0.0
    %1000 = vmatpush2.msra.mxu0 0.0
    %1001 = vmatprep.subr.mxu0 0.0
    %1002 = vmatpush2.msra.mxu0 0.0
    %1003 = vmatprep.subr.mxu0 0.0
    %1004 = vmatpush2.msra.mxu0 0.0
    %1005 = vmatprep.subr.mxu0 0.0
    %1006 = vmatpush2.msra.mxu0 0.0
    %1007 = vmatprep.subr.mxu0 0.0
    %1008 = vmatpush2.msra.mxu0 0.0
    %1009 = vmatprep.subr.mxu0 0.0
    %1010 = vmatpush2.msra.mxu0 0.0
    %1011 = vmatprep.subr.mxu0 0.0
    %1012 = vmatpush2.msra.mxu0 0.0
    %1013 = vmatprep.subr.mxu0 0.0
    %1014 = vmatpush2.msra.mxu0 0.0
    %1015 = vmatprep.mubr.f32.mxu0 0.0
    %1016 = vmatmul.mubr.f32.gmra.mxu0 %v949
    %v1017 = vpop.f32.mrf.mxu0
    %v1018 = vadd.f32 0.0, %v1017
    %v1019 = vpop.f32.mrf.mxu0
    %v1020 = vadd.f32 0.0, %v1019
    %1021 = vdwg.mxu0
    %1022 = vmatprep.subr.mxu0 %v380
    %1023 = vmatpush1.msra.mxu0 %v379
    %1024 = vmatprep.subr.mxu0 %v376
    %1025 = vmatpush1.msra.mxu0 %v375
    %1026 = vmatprep.subr.mxu0 %v372
    %1027 = vmatpush1.msra.mxu0 %v371
    %1028 = vmatprep.subr.mxu0 %v368
    %1029 = vmatpush1.msra.mxu0 %v367
    %1030 = vmatprep.subr.mxu0 %v364
    %1031 = vmatpush1.msra.mxu0 %v363
    %1032 = vmatprep.subr.mxu0 %v360
    %1033 = vmatpush1.msra.mxu0 %v359
    %1034 = vmatprep.subr.mxu0 %v356
    %1035 = vmatpush1.msra.mxu0 %v355
    %1036 = vmatprep.subr.mxu0 %v352
    %1037 = vmatpush1.msra.mxu0 %v351
    %1038 = vmatprep.subr.mxu0 %v348
    %1039 = vmatpush1.msra.mxu0 %v347
    %1040 = vmatprep.subr.mxu0 %v344
    %1041 = vmatpush1.msra.mxu0 %v343
    %1042 = vmatprep.subr.mxu0 %v340
    %1043 = vmatpush1.msra.mxu0 %v339
    %1044 = vmatprep.subr.mxu0 %v336
    %1045 = vmatpush1.msra.mxu0 %v335
    %1046 = vmatprep.subr.mxu0 %v332
    %1047 = vmatpush1.msra.mxu0 %v331
    %1048 = vmatprep.subr.mxu0 %v328
    %1049 = vmatpush1.msra.mxu0 %v327
    %1050 = vmatprep.subr.mxu0 %v324
    %1051 = vmatpush1.msra.mxu0 %v323
    %1052 = vmatprep.subr.mxu0 %v320
    %1053 = vmatpush1.msra.mxu0 %v319
    %1054 = vmatprep.subr.mxu0 0.0
    %1055 = vmatpush2.msra.mxu0 0.0
    %1056 = vmatprep.subr.mxu0 0.0
    %1057 = vmatpush2.msra.mxu0 0.0
    %1058 = vmatprep.subr.mxu0 0.0
    %1059 = vmatpush2.msra.mxu0 0.0
    %1060 = vmatprep.subr.mxu0 0.0
    %1061 = vmatpush2.msra.mxu0 0.0
    %1062 = vmatprep.subr.mxu0 0.0
    %1063 = vmatpush2.msra.mxu0 0.0
    %1064 = vmatprep.subr.mxu0 0.0
    %1065 = vmatpush2.msra.mxu0 0.0
    %1066 = vmatprep.subr.mxu0 0.0
    %1067 = vmatpush2.msra.mxu0 0.0
    %1068 = vmatprep.subr.mxu0 0.0
    %1069 = vmatpush2.msra.mxu0 0.0
    %1070 = vmatprep.subr.mxu0 0.0
    %1071 = vmatpush2.msra.mxu0 0.0
    %1072 = vmatprep.subr.mxu0 0.0
    %1073 = vmatpush2.msra.mxu0 0.0
    %1074 = vmatprep.subr.mxu0 0.0
    %1075 = vmatpush2.msra.mxu0 0.0
    %1076 = vmatprep.subr.mxu0 0.0
    %1077 = vmatpush2.msra.mxu0 0.0
    %1078 = vmatprep.subr.mxu0 0.0
    %1079 = vmatpush2.msra.mxu0 0.0
    %1080 = vmatprep.subr.mxu0 0.0
    %1081 = vmatpush2.msra.mxu0 0.0
    %1082 = vmatprep.subr.mxu0 0.0
    %1083 = vmatpush2.msra.mxu0 0.0
    %1084 = vmatprep.subr.mxu0 0.0
    %1085 = vmatpush2.msra.mxu0 0.0
    %1086 = vmatprep.mubr.f32.mxu0 0.0
    %1087 = vmatmul.mubr.f32.gmra.mxu0 %v949
    %v1088 = vpop.f32.mrf.mxu0
    %v1089 = vadd.f32 0.0, %v1088
    %v1090 = vpop.f32.mrf.mxu0
    %v1091 = vadd.f32 0.0, %v1090
    %1092 = vdwg.mxu0
    %v1093 = vadd.f32 %v175, %v1018
    %v1094 = vadd.f32 %v177, %v1020
    %v1095 = vadd.f32 %v270, %v1089
    %v1096 = vadd.f32 %v272, %v1091
    %v1097 = vxor.u32 %v1093, 2147483648
    %v1098 = vxor.u32 %v1094, 2147483648
    %v1099 = vxor.u32 %v1095, 2147483648
    %v1100 = vxor.u32 %v1096, 2147483648
    %v1101 = vmul.f32 %v1097, 1.442695
    %v1102 = vpow.pop %v1101
    %v1103 = vmul.f32 %v1098, 1.442695
    %v1104 = vpow.pop %v1103
    %v1105 = vmul.f32 %v1099, 1.442695
    %v1106 = vpow.pop %v1105
    %v1107 = vmul.f32 %v1100, 1.442695
    %v1108 = vpow.pop %v1107
    %v1109 = vadd.f32 %v1102, 1.0
    %v1110 = vadd.f32 %v1104, 1.0
    %v1111 = vadd.f32 %v1106, 1.0
    %v1112 = vadd.f32 %v1108, 1.0
    %v1113 = vrcp.pop %v1109
    %v1114 = vmul.f32 1.0, %v1113
    %v1115 = vrcp.pop %v1110
    %v1116 = vmul.f32 1.0, %v1115
    %v1117 = vrcp.pop %v1111
    %v1118 = vmul.f32 1.0, %v1117
    %v1119 = vrcp.pop %v1112
    %v1120 = vmul.f32 1.0, %v1119
    %v1121 = vmul.f32 %v1118, 2.0
    %v1122 = vsub.f32 %v1121, 1.0
    %v1124 = vrot.slane %v945, 4
    %v1126 = vmul.f32 %v1116, %v1124
    %v1127 = vmul.f32 %v1114, %v1122
    %v1128 = vadd.f32 %v1126, %v1127
    %v1129 = vtanh.pop %v1128
    %v1130 = vmul.f32 %v1120, %v1129
    %1131 = vmatprep.subr.mxu0 %v378
    %1132 = vmatpush1.msra.mxu0 %v377
    %1133 = vmatprep.subr.mxu0 %v374
    %1134 = vmatpush1.msra.mxu0 %v373
    %1135 = vmatprep.subr.mxu0 %v370
    %1136 = vmatpush1.msra.mxu0 %v369
    %1137 = vmatprep.subr.mxu0 %v366
    %1138 = vmatpush1.msra.mxu0 %v365
    %1139 = vmatprep.subr.mxu0 %v362
    %1140 = vmatpush1.msra.mxu0 %v361
    %1141 = vmatprep.subr.mxu0 %v358
    %1142 = vmatpush1.msra.mxu0 %v357
    %1143 = vmatprep.subr.mxu0 %v354
    %1144 = vmatpush1.msra.mxu0 %v353
    %1145 = vmatprep.subr.mxu0 %v350
    %1146 = vmatpush1.msra.mxu0 %v349
    %1147 = vmatprep.subr.mxu0 %v346
    %1148 = vmatpush1.msra.mxu0 %v345
    %1149 = vmatprep.subr.mxu0 %v342
    %1150 = vmatpush1.msra.mxu0 %v341
    %1151 = vmatprep.subr.mxu0 %v338
    %1152 = vmatpush1.msra.mxu0 %v337
    %1153 = vmatprep.subr.mxu0 %v334
    %1154 = vmatpush1.msra.mxu0 %v333
    %1155 = vmatprep.subr.mxu0 %v330
    %1156 = vmatpush1.msra.mxu0 %v329
    %1157 = vmatprep.subr.mxu0 %v326
    %1158 = vmatpush1.msra.mxu0 %v325
    %1159 = vmatprep.subr.mxu0 %v322
    %1160 = vmatpush1.msra.mxu0 %v321
    %1161 = vmatprep.subr.mxu0 %v318
    %1162 = vmatpush1.msra.mxu0 %v317
    %1163 = vmatprep.subr.mxu0 0.0
    %1164 = vmatpush2.msra.mxu0 0.0
    %1165 = vmatprep.subr.mxu0 0.0
    %1166 = vmatpush2.msra.mxu0 0.0
    %1167 = vmatprep.subr.mxu0 0.0
    %1168 = vmatpush2.msra.mxu0 0.0
    %1169 = vmatprep.subr.mxu0 0.0
    %1170 = vmatpush2.msra.mxu0 0.0
    %1171 = vmatprep.subr.mxu0 0.0
    %1172 = vmatpush2.msra.mxu0 0.0
    %1173 = vmatprep.subr.mxu0 0.0
    %1174 = vmatpush2.msra.mxu0 0.0
    %1175 = vmatprep.subr.mxu0 0.0
    %1176 = vmatpush2.msra.mxu0 0.0
    %1177 = vmatprep.subr.mxu0 0.0
    %1178 = vmatpush2.msra.mxu0 0.0
    %1179 = vmatprep.subr.mxu0 0.0
    %1180 = vmatpush2.msra.mxu0 0.0
    %1181 = vmatprep.subr.mxu0 0.0
    %1182 = vmatpush2.msra.mxu0 0.0
    %1183 = vmatprep.subr.mxu0 0.0
    %1184 = vmatpush2.msra.mxu0 0.0
    %1185 = vmatprep.subr.mxu0 0.0
    %1186 = vmatpush2.msra.mxu0 0.0
    %1187 = vmatprep.subr.mxu0 0.0
    %1188 = vmatpush2.msra.mxu0 0.0
    %1189 = vmatprep.subr.mxu0 0.0
    %1190 = vmatpush2.msra.mxu0 0.0
    %1191 = vmatprep.subr.mxu0 0.0
    %1192 = vmatpush2.msra.mxu0 0.0
    %1193 = vmatprep.subr.mxu0 0.0
    %1194 = vmatpush2.msra.mxu0 0.0
    %1195 = vmatprep.mubr.f32.mxu0 0.0
    %1196 = vmatmul.mubr.f32.gmra.mxu0 %v1130
    %v1197 = vpop.f32.mrf.mxu0
    %v1198 = vadd.f32 0.0, %v1197
    %v1199 = vpop.f32.mrf.mxu0
    %v1200 = vadd.f32 0.0, %v1199
    %1201 = vdwg.mxu0
    %1202 = vmatprep.subr.mxu0 %v380
    %1203 = vmatpush1.msra.mxu0 %v379
    %1204 = vmatprep.subr.mxu0 %v376
    %1205 = vmatpush1.msra.mxu0 %v375
    %1206 = vmatprep.subr.mxu0 %v372
    %1207 = vmatpush1.msra.mxu0 %v371
    %1208 = vmatprep.subr.mxu0 %v368
    %1209 = vmatpush1.msra.mxu0 %v367
    %1210 = vmatprep.subr.mxu0 %v364
    %1211 = vmatpush1.msra.mxu0 %v363
    %1212 = vmatprep.subr.mxu0 %v360
    %1213 = vmatpush1.msra.mxu0 %v359
    %1214 = vmatprep.subr.mxu0 %v356
    %1215 = vmatpush1.msra.mxu0 %v355
    %1216 = vmatprep.subr.mxu0 %v352
    %1217 = vmatpush1.msra.mxu0 %v351
    %1218 = vmatprep.subr.mxu0 %v348
    %1219 = vmatpush1.msra.mxu0 %v347
    %1220 = vmatprep.subr.mxu0 %v344
    %1221 = vmatpush1.msra.mxu0 %v343
    %1222 = vmatprep.subr.mxu0 %v340
    %1223 = vmatpush1.msra.mxu0 %v339
    %1224 = vmatprep.subr.mxu0 %v336
    %1225 = vmatpush1.msra.mxu0 %v335
    %1226 = vmatprep.subr.mxu0 %v332
    %1227 = vmatpush1.msra.mxu0 %v331
    %1228 = vmatprep.subr.mxu0 %v328
    %1229 = vmatpush1.msra.mxu0 %v327
    %1230 = vmatprep.subr.mxu0 %v324
    %1231 = vmatpush1.msra.mxu0 %v323
    %1232 = vmatprep.subr.mxu0 %v320
    %1233 = vmatpush1.msra.mxu0 %v319
    %1234 = vmatprep.subr.mxu0 0.0
    %1235 = vmatpush2.msra.mxu0 0.0
    %1236 = vmatprep.subr.mxu0 0.0
    %1237 = vmatpush2.msra.mxu0 0.0
    %1238 = vmatprep.subr.mxu0 0.0
    %1239 = vmatpush2.msra.mxu0 0.0
    %1240 = vmatprep.subr.mxu0 0.0
    %1241 = vmatpush2.msra.mxu0 0.0
    %1242 = vmatprep.subr.mxu0 0.0
    %1243 = vmatpush2.msra.mxu0 0.0
    %1244 = vmatprep.subr.mxu0 0.0
    %1245 = vmatpush2.msra.mxu0 0.0
    %1246 = vmatprep.subr.mxu0 0.0
    %1247 = vmatpush2.msra.mxu0 0.0
    %1248 = vmatprep.subr.mxu0 0.0
    %1249 = vmatpush2.msra.mxu0 0.0
    %1250 = vmatprep.subr.mxu0 0.0
    %1251 = vmatpush2.msra.mxu0 0.0
    %1252 = vmatprep.subr.mxu0 0.0
    %1253 = vmatpush2.msra.mxu0 0.0
    %1254 = vmatprep.subr.mxu0 0.0
    %1255 = vmatpush2.msra.mxu0 0.0
    %1256 = vmatprep.subr.mxu0 0.0
    %1257 = vmatpush2.msra.mxu0 0.0
    %1258 = vmatprep.subr.mxu0 0.0
    %1259 = vmatpush2.msra.mxu0 0.0
    %1260 = vmatprep.subr.mxu0 0.0
    %1261 = vmatpush2.msra.mxu0 0.0
    %1262 = vmatprep.subr.mxu0 0.0
    %1263 = vmatpush2.msra.mxu0 0.0
    %1264 = vmatprep.subr.mxu0 0.0
    %1265 = vmatpush2.msra.mxu0 0.0
    %1266 = vmatprep.mubr.f32.mxu0 0.0
    %1267 = vmatmul.mubr.f32.gmra.mxu0 %v1130
    %v1268 = vpop.f32.mrf.mxu0
    %v1269 = vadd.f32 0.0, %v1268
    %v1270 = vpop.f32.mrf.mxu0
    %v1271 = vadd.f32 0.0, %v1270
    %1272 = vdwg.mxu0
    %v1277 = vrot.slane %v1198, 4
    %v1278 = vrot.slane %v1200, 4
    %v1279 = vrot.slane %v1269, 4
    %v1280 = vrot.slane %v1271, 4
    %v1285 = vadd.f32 %v175, %v1277
    %v1286 = vadd.f32 %v177, %v1278
    %v1287 = vadd.f32 %v270, %v1279
    %v1288 = vadd.f32 %v272, %v1280
    %v1289 = vxor.u32 %v1285, 2147483648
    %v1290 = vxor.u32 %v1286, 2147483648
    %v1291 = vxor.u32 %v1287, 2147483648
    %v1292 = vxor.u32 %v1288, 2147483648
    %v1293 = vmul.f32 %v1289, 1.442695
    %v1294 = vpow.pop %v1293
    %v1295 = vmul.f32 %v1290, 1.442695
    %v1296 = vpow.pop %v1295
    %v1297 = vmul.f32 %v1291, 1.442695
    %v1298 = vpow.pop %v1297
    %v1299 = vmul.f32 %v1292, 1.442695
    %v1300 = vpow.pop %v1299
    %v1301 = vadd.f32 %v1294, 1.0
    %v1302 = vadd.f32 %v1296, 1.0
    %v1303 = vadd.f32 %v1298, 1.0
    %v1304 = vadd.f32 %v1300, 1.0
    %v1305 = vrcp.pop %v1301
    %v1306 = vmul.f32 1.0, %v1305
    %v1307 = vrcp.pop %v1302
    %v1308 = vmul.f32 1.0, %v1307
    %v1309 = vrcp.pop %v1303
    %v1310 = vmul.f32 1.0, %v1309
    %v1311 = vrcp.pop %v1304
    %v1312 = vmul.f32 1.0, %v1311
    %v1313 = vmul.f32 %v1310, 2.0
    %v1314 = vsub.f32 %v1313, 1.0
    %v1316 = vrot.slane %v1128, 4
    %v1318 = vmul.f32 %v1308, %v1316
    %v1319 = vmul.f32 %v1306, %v1314
    %v1320 = vadd.f32 %v1318, %v1319
    %v1321 = vtanh.pop %v1320
    %v1322 = vmul.f32 %v1312, %v1321
    %v1324 = vrot.slane %v1322, 4
    %1326 = vmatprep.subr.mxu0 %v378
    %1327 = vmatpush1.msra.mxu0 %v377
    %1328 = vmatprep.subr.mxu0 %v374
    %1329 = vmatpush1.msra.mxu0 %v373
    %1330 = vmatprep.subr.mxu0 %v370
    %1331 = vmatpush1.msra.mxu0 %v369
    %1332 = vmatprep.subr.mxu0 %v366
    %1333 = vmatpush1.msra.mxu0 %v365
    %1334 = vmatprep.subr.mxu0 %v362
    %1335 = vmatpush1.msra.mxu0 %v361
    %1336 = vmatprep.subr.mxu0 %v358
    %1337 = vmatpush1.msra.mxu0 %v357
    %1338 = vmatprep.subr.mxu0 %v354
    %1339 = vmatpush1.msra.mxu0 %v353
    %1340 = vmatprep.subr.mxu0 %v350
    %1341 = vmatpush1.msra.mxu0 %v349
    %1342 = vmatprep.subr.mxu0 %v346
    %1343 = vmatpush1.msra.mxu0 %v345
    %1344 = vmatprep.subr.mxu0 %v342
    %1345 = vmatpush1.msra.mxu0 %v341
    %1346 = vmatprep.subr.mxu0 %v338
    %1347 = vmatpush1.msra.mxu0 %v337
    %1348 = vmatprep.subr.mxu0 %v334
    %1349 = vmatpush1.msra.mxu0 %v333
    %1350 = vmatprep.subr.mxu0 %v330
    %1351 = vmatpush1.msra.mxu0 %v329
    %1352 = vmatprep.subr.mxu0 %v326
    %1353 = vmatpush1.msra.mxu0 %v325
    %1354 = vmatprep.subr.mxu0 %v322
    %1355 = vmatpush1.msra.mxu0 %v321
    %1356 = vmatprep.subr.mxu0 %v318
    %1357 = vmatpush1.msra.mxu0 %v317
    %1358 = vmatprep.subr.mxu0 0.0
    %1359 = vmatpush2.msra.mxu0 0.0
    %1360 = vmatprep.subr.mxu0 0.0
    %1361 = vmatpush2.msra.mxu0 0.0
    %1362 = vmatprep.subr.mxu0 0.0
    %1363 = vmatpush2.msra.mxu0 0.0
    %1364 = vmatprep.subr.mxu0 0.0
    %1365 = vmatpush2.msra.mxu0 0.0
    %1366 = vmatprep.subr.mxu0 0.0
    %1367 = vmatpush2.msra.mxu0 0.0
    %1368 = vmatprep.subr.mxu0 0.0
    %1369 = vmatpush2.msra.mxu0 0.0
    %1370 = vmatprep.subr.mxu0 0.0
    %1371 = vmatpush2.msra.mxu0 0.0
    %1372 = vmatprep.subr.mxu0 0.0
    %1373 = vmatpush2.msra.mxu0 0.0
    %1374 = vmatprep.subr.mxu0 0.0
    %1375 = vmatpush2.msra.mxu0 0.0
    %1376 = vmatprep.subr.mxu0 0.0
    %1377 = vmatpush2.msra.mxu0 0.0
    %1378 = vmatprep.subr.mxu0 0.0
    %1379 = vmatpush2.msra.mxu0 0.0
    %1380 = vmatprep.subr.mxu0 0.0
    %1381 = vmatpush2.msra.mxu0 0.0
    %1382 = vmatprep.subr.mxu0 0.0
    %1383 = vmatpush2.msra.mxu0 0.0
    %1384 = vmatprep.subr.mxu0 0.0
    %1385 = vmatpush2.msra.mxu0 0.0
    %1386 = vmatprep.subr.mxu0 0.0
    %1387 = vmatpush2.msra.mxu0 0.0
    %1388 = vmatprep.subr.mxu0 0.0
    %1389 = vmatpush2.msra.mxu0 0.0
    %1390 = vmatprep.mubr.f32.mxu0 0.0
    %1391 = vmatmul.mubr.f32.gmra.mxu0 %v1324
    %v1392 = vpop.f32.mrf.mxu0
    %v1393 = vadd.f32 0.0, %v1392
    %v1394 = vpop.f32.mrf.mxu0
    %v1395 = vadd.f32 0.0, %v1394
    %1396 = vdwg.mxu0
    %1397 = vmatprep.subr.mxu0 %v380
    %1398 = vmatpush1.msra.mxu0 %v379
    %1399 = vmatprep.subr.mxu0 %v376
    %1400 = vmatpush1.msra.mxu0 %v375
    %1401 = vmatprep.subr.mxu0 %v372
    %1402 = vmatpush1.msra.mxu0 %v371
    %1403 = vmatprep.subr.mxu0 %v368
    %1404 = vmatpush1.msra.mxu0 %v367
    %1405 = vmatprep.subr.mxu0 %v364
    %1406 = vmatpush1.msra.mxu0 %v363
    %1407 = vmatprep.subr.mxu0 %v360
    %1408 = vmatpush1.msra.mxu0 %v359
    %1409 = vmatprep.subr.mxu0 %v356
    %1410 = vmatpush1.msra.mxu0 %v355
    %1411 = vmatprep.subr.mxu0 %v352
    %1412 = vmatpush1.msra.mxu0 %v351
    %1413 = vmatprep.subr.mxu0 %v348
    %1414 = vmatpush1.msra.mxu0 %v347
    %1415 = vmatprep.subr.mxu0 %v344
    %1416 = vmatpush1.msra.mxu0 %v343
    %1417 = vmatprep.subr.mxu0 %v340
    %1418 = vmatpush1.msra.mxu0 %v339
    %1419 = vmatprep.subr.mxu0 %v336
    %1420 = vmatpush1.msra.mxu0 %v335
    %1421 = vmatprep.subr.mxu0 %v332
    %1422 = vmatpush1.msra.mxu0 %v331
    %1423 = vmatprep.subr.mxu0 %v328
    %1424 = vmatpush1.msra.mxu0 %v327
    %1425 = vmatprep.subr.mxu0 %v324
    %1426 = vmatpush1.msra.mxu0 %v323
    %1427 = vmatprep.subr.mxu0 %v320
    %1428 = vmatpush1.msra.mxu0 %v319
    %1429 = vmatprep.subr.mxu0 0.0
    %1430 = vmatpush2.msra.mxu0 0.0
    %1431 = vmatprep.subr.mxu0 0.0
    %1432 = vmatpush2.msra.mxu0 0.0
    %1433 = vmatprep.subr.mxu0 0.0
    %1434 = vmatpush2.msra.mxu0 0.0
    %1435 = vmatprep.subr.mxu0 0.0
    %1436 = vmatpush2.msra.mxu0 0.0
    %1437 = vmatprep.subr.mxu0 0.0
    %1438 = vmatpush2.msra.mxu0 0.0
    %1439 = vmatprep.subr.mxu0 0.0
    %1440 = vmatpush2.msra.mxu0 0.0
    %1441 = vmatprep.subr.mxu0 0.0
    %1442 = vmatpush2.msra.mxu0 0.0
    %1443 = vmatprep.subr.mxu0 0.0
    %1444 = vmatpush2.msra.mxu0 0.0
    %1445 = vmatprep.subr.mxu0 0.0
    %1446 = vmatpush2.msra.mxu0 0.0
    %1447 = vmatprep.subr.mxu0 0.0
    %1448 = vmatpush2.msra.mxu0 0.0
    %1449 = vmatprep.subr.mxu0 0.0
    %1450 = vmatpush2.msra.mxu0 0.0
    %1451 = vmatprep.subr.mxu0 0.0
    %1452 = vmatpush2.msra.mxu0 0.0
    %1453 = vmatprep.subr.mxu0 0.0
    %1454 = vmatpush2.msra.mxu0 0.0
    %1455 = vmatprep.subr.mxu0 0.0
    %1456 = vmatpush2.msra.mxu0 0.0
    %1457 = vmatprep.subr.mxu0 0.0
    %1458 = vmatpush2.msra.mxu0 0.0
    %1459 = vmatprep.subr.mxu0 0.0
    %1460 = vmatpush2.msra.mxu0 0.0
    %1461 = vmatprep.mubr.f32.mxu0 0.0
    %1462 = vmatmul.mubr.f32.gmra.mxu0 %v1324
    %v1463 = vpop.f32.mrf.mxu0
    %v1464 = vadd.f32 0.0, %v1463
    %v1465 = vpop.f32.mrf.mxu0
    %v1466 = vadd.f32 0.0, %v1465
    %1467 = vdwg.mxu0
    %v1468 = vadd.f32 %v181, %v1393
    %v1469 = vadd.f32 %v183, %v1395
    %v1470 = vadd.f32 %v276, %v1464
    %v1471 = vadd.f32 %v278, %v1466
    %v1472 = vxor.u32 %v1468, 2147483648
    %v1473 = vxor.u32 %v1469, 2147483648
    %v1474 = vxor.u32 %v1470, 2147483648
    %v1475 = vxor.u32 %v1471, 2147483648
    %v1476 = vmul.f32 %v1472, 1.442695
    %v1477 = vpow.pop %v1476
    %v1478 = vmul.f32 %v1473, 1.442695
    %v1479 = vpow.pop %v1478
    %v1480 = vmul.f32 %v1474, 1.442695
    %v1481 = vpow.pop %v1480
    %v1482 = vmul.f32 %v1475, 1.442695
    %v1483 = vpow.pop %v1482
    %v1484 = vadd.f32 %v1477, 1.0
    %v1485 = vadd.f32 %v1479, 1.0
    %v1486 = vadd.f32 %v1481, 1.0
    %v1487 = vadd.f32 %v1483, 1.0
    %v1488 = vrcp.pop %v1484
    %v1489 = vmul.f32 1.0, %v1488
    %v1490 = vrcp.pop %v1485
    %v1491 = vmul.f32 1.0, %v1490
    %v1492 = vrcp.pop %v1486
    %v1493 = vmul.f32 1.0, %v1492
    %v1494 = vrcp.pop %v1487
    %v1495 = vmul.f32 1.0, %v1494
    %v1496 = vmul.f32 %v1493, 2.0
    %v1497 = vsub.f32 %v1496, 1.0
    %v1499 = vrot.slane %v1320, 4
    %v1501 = vmul.f32 %v1491, %v1499
    %v1502 = vmul.f32 %v1489, %v1497
    %v1503 = vadd.f32 %v1501, %v1502
    %v1504 = vtanh.pop %v1503
    %v1505 = vmul.f32 %v1495, %v1504
    %1506 = vmatprep.subr.mxu0 %v378
    %1507 = vmatpush1.msra.mxu0 %v377
    %1508 = vmatprep.subr.mxu0 %v374
    %1509 = vmatpush1.msra.mxu0 %v373
    %1510 = vmatprep.subr.mxu0 %v370
    %1511 = vmatpush1.msra.mxu0 %v369
    %1512 = vmatprep.subr.mxu0 %v366
    %1513 = vmatpush1.msra.mxu0 %v365
    %1514 = vmatprep.subr.mxu0 %v362
    %1515 = vmatpush1.msra.mxu0 %v361
    %1516 = vmatprep.subr.mxu0 %v358
    %1517 = vmatpush1.msra.mxu0 %v357
    %1518 = vmatprep.subr.mxu0 %v354
    %1519 = vmatpush1.msra.mxu0 %v353
    %1520 = vmatprep.subr.mxu0 %v350
    %1521 = vmatpush1.msra.mxu0 %v349
    %1522 = vmatprep.subr.mxu0 %v346
    %1523 = vmatpush1.msra.mxu0 %v345
    %1524 = vmatprep.subr.mxu0 %v342
    %1525 = vmatpush1.msra.mxu0 %v341
    %1526 = vmatprep.subr.mxu0 %v338
    %1527 = vmatpush1.msra.mxu0 %v337
    %1528 = vmatprep.subr.mxu0 %v334
    %1529 = vmatpush1.msra.mxu0 %v333
    %1530 = vmatprep.subr.mxu0 %v330
    %1531 = vmatpush1.msra.mxu0 %v329
    %1532 = vmatprep.subr.mxu0 %v326
    %1533 = vmatpush1.msra.mxu0 %v325
    %1534 = vmatprep.subr.mxu0 %v322
    %1535 = vmatpush1.msra.mxu0 %v321
    %1536 = vmatprep.subr.mxu0 %v318
    %1537 = vmatpush1.msra.mxu0 %v317
    %1538 = vmatprep.subr.mxu0 0.0
    %1539 = vmatpush2.msra.mxu0 0.0
    %1540 = vmatprep.subr.mxu0 0.0
    %1541 = vmatpush2.msra.mxu0 0.0
    %1542 = vmatprep.subr.mxu0 0.0
    %1543 = vmatpush2.msra.mxu0 0.0
    %1544 = vmatprep.subr.mxu0 0.0
    %1545 = vmatpush2.msra.mxu0 0.0
    %1546 = vmatprep.subr.mxu0 0.0
    %1547 = vmatpush2.msra.mxu0 0.0
    %1548 = vmatprep.subr.mxu0 0.0
    %1549 = vmatpush2.msra.mxu0 0.0
    %1550 = vmatprep.subr.mxu0 0.0
    %1551 = vmatpush2.msra.mxu0 0.0
    %1552 = vmatprep.subr.mxu0 0.0
    %1553 = vmatpush2.msra.mxu0 0.0
    %1554 = vmatprep.subr.mxu0 0.0
    %1555 = vmatpush2.msra.mxu0 0.0
    %1556 = vmatprep.subr.mxu0 0.0
    %1557 = vmatpush2.msra.mxu0 0.0
    %1558 = vmatprep.subr.mxu0 0.0
    %1559 = vmatpush2.msra.mxu0 0.0
    %1560 = vmatprep.subr.mxu0 0.0
    %1561 = vmatpush2.msra.mxu0 0.0
    %1562 = vmatprep.subr.mxu0 0.0
    %1563 = vmatpush2.msra.mxu0 0.0
    %1564 = vmatprep.subr.mxu0 0.0
    %1565 = vmatpush2.msra.mxu0 0.0
    %1566 = vmatprep.subr.mxu0 0.0
    %1567 = vmatpush2.msra.mxu0 0.0
    %1568 = vmatprep.subr.mxu0 0.0
    %1569 = vmatpush2.msra.mxu0 0.0
    %1570 = vmatprep.mubr.f32.mxu0 0.0
    %1571 = vmatmul.mubr.f32.gmra.mxu0 %v1505
    %v1572 = vpop.f32.mrf.mxu0
    %v1573 = vadd.f32 0.0, %v1572
    %v1574 = vpop.f32.mrf.mxu0
    %v1575 = vadd.f32 0.0, %v1574
    %1576 = vdwg.mxu0
    %1577 = vmatprep.subr.mxu0 %v380
    %1578 = vmatpush1.msra.mxu0 %v379
    %1579 = vmatprep.subr.mxu0 %v376
    %1580 = vmatpush1.msra.mxu0 %v375
    %1581 = vmatprep.subr.mxu0 %v372
    %1582 = vmatpush1.msra.mxu0 %v371
    %1583 = vmatprep.subr.mxu0 %v368
    %1584 = vmatpush1.msra.mxu0 %v367
    %1585 = vmatprep.subr.mxu0 %v364
    %1586 = vmatpush1.msra.mxu0 %v363
    %1587 = vmatprep.subr.mxu0 %v360
    %1588 = vmatpush1.msra.mxu0 %v359
    %1589 = vmatprep.subr.mxu0 %v356
    %1590 = vmatpush1.msra.mxu0 %v355
    %1591 = vmatprep.subr.mxu0 %v352
    %1592 = vmatpush1.msra.mxu0 %v351
    %1593 = vmatprep.subr.mxu0 %v348
    %1594 = vmatpush1.msra.mxu0 %v347
    %1595 = vmatprep.subr.mxu0 %v344
    %1596 = vmatpush1.msra.mxu0 %v343
    %1597 = vmatprep.subr.mxu0 %v340
    %1598 = vmatpush1.msra.mxu0 %v339
    %1599 = vmatprep.subr.mxu0 %v336
    %1600 = vmatpush1.msra.mxu0 %v335
    %1601 = vmatprep.subr.mxu0 %v332
    %1602 = vmatpush1.msra.mxu0 %v331
    %1603 = vmatprep.subr.mxu0 %v328
    %1604 = vmatpush1.msra.mxu0 %v327
    %1605 = vmatprep.subr.mxu0 %v324
    %1606 = vmatpush1.msra.mxu0 %v323
    %1607 = vmatprep.subr.mxu0 %v320
    %1608 = vmatpush1.msra.mxu0 %v319
    %1609 = vmatprep.subr.mxu0 0.0
    %1610 = vmatpush2.msra.mxu0 0.0
    %1611 = vmatprep.subr.mxu0 0.0
    %1612 = vmatpush2.msra.mxu0 0.0
    %1613 = vmatprep.subr.mxu0 0.0
    %1614 = vmatpush2.msra.mxu0 0.0
    %1615 = vmatprep.subr.mxu0 0.0
    %1616 = vmatpush2.msra.mxu0 0.0
    %1617 = vmatprep.subr.mxu0 0.0
    %1618 = vmatpush2.msra.mxu0 0.0
    %1619 = vmatprep.subr.mxu0 0.0
    %1620 = vmatpush2.msra.mxu0 0.0
    %1621 = vmatprep.subr.mxu0 0.0
    %1622 = vmatpush2.msra.mxu0 0.0
    %1623 = vmatprep.subr.mxu0 0.0
    %1624 = vmatpush2.msra.mxu0 0.0
    %1625 = vmatprep.subr.mxu0 0.0
    %1626 = vmatpush2.msra.mxu0 0.0
    %1627 = vmatprep.subr.mxu0 0.0
    %1628 = vmatpush2.msra.mxu0 0.0
    %1629 = vmatprep.subr.mxu0 0.0
    %1630 = vmatpush2.msra.mxu0 0.0
    %1631 = vmatprep.subr.mxu0 0.0
    %1632 = vmatpush2.msra.mxu0 0.0
    %1633 = vmatprep.subr.mxu0 0.0
    %1634 = vmatpush2.msra.mxu0 0.0
    %1635 = vmatprep.subr.mxu0 0.0
    %1636 = vmatpush2.msra.mxu0 0.0
    %1637 = vmatprep.subr.mxu0 0.0
    %1638 = vmatpush2.msra.mxu0 0.0
    %1639 = vmatprep.subr.mxu0 0.0
    %1640 = vmatpush2.msra.mxu0 0.0
    %1641 = vmatprep.mubr.f32.mxu0 0.0
    %1642 = vmatmul.mubr.f32.gmra.mxu0 %v1505
    %v1643 = vpop.f32.mrf.mxu0
    %v1644 = vadd.f32 0.0, %v1643
    %v1645 = vpop.f32.mrf.mxu0
    %v1646 = vadd.f32 0.0, %v1645
    %1647 = vdwg.mxu0
    %v1652 = vrot.slane %v1573, 4
    %v1653 = vrot.slane %v1575, 4
    %v1654 = vrot.slane %v1644, 4
    %v1655 = vrot.slane %v1646, 4
    %v1660 = vadd.f32 %v181, %v1652
    %v1661 = vadd.f32 %v183, %v1653
    %v1662 = vadd.f32 %v276, %v1654
    %v1663 = vadd.f32 %v278, %v1655
    %v1664 = vxor.u32 %v1660, 2147483648
    %v1665 = vxor.u32 %v1661, 2147483648
    %v1666 = vxor.u32 %v1662, 2147483648
    %v1667 = vxor.u32 %v1663, 2147483648
    %v1668 = vmul.f32 %v1664, 1.442695
    %v1669 = vpow.pop %v1668
    %v1670 = vmul.f32 %v1665, 1.442695
    %v1671 = vpow.pop %v1670
    %v1672 = vmul.f32 %v1666, 1.442695
    %v1673 = vpow.pop %v1672
    %v1674 = vmul.f32 %v1667, 1.442695
    %v1675 = vpow.pop %v1674
    %v1676 = vadd.f32 %v1669, 1.0
    %v1677 = vadd.f32 %v1671, 1.0
    %v1678 = vadd.f32 %v1673, 1.0
    %v1679 = vadd.f32 %v1675, 1.0
    %v1680 = vrcp.pop %v1676
    %v1681 = vmul.f32 1.0, %v1680
    %v1682 = vrcp.pop %v1677
    %v1683 = vmul.f32 1.0, %v1682
    %v1684 = vrcp.pop %v1678
    %v1685 = vmul.f32 1.0, %v1684
    %v1686 = vrcp.pop %v1679
    %v1687 = vmul.f32 1.0, %v1686
    %v1688 = vmul.f32 %v1685, 2.0
    %v1689 = vsub.f32 %v1688, 1.0
    %v1691 = vrot.slane %v1503, 4
    %v1693 = vmul.f32 %v1683, %v1691
    %v1694 = vmul.f32 %v1681, %v1689
    %v1695 = vadd.f32 %v1693, %v1694
    %v1696 = vtanh.pop %v1695
    %v1697 = vmul.f32 %v1687, %v1696
    %v1699 = vrot.slane %v1697, 4
    %1701 = vmatprep.subr.mxu0 %v378
    %1702 = vmatpush1.msra.mxu0 %v377
    %1703 = vmatprep.subr.mxu0 %v374
    %1704 = vmatpush1.msra.mxu0 %v373
    %1705 = vmatprep.subr.mxu0 %v370
    %1706 = vmatpush1.msra.mxu0 %v369
    %1707 = vmatprep.subr.mxu0 %v366
    %1708 = vmatpush1.msra.mxu0 %v365
    %1709 = vmatprep.subr.mxu0 %v362
    %1710 = vmatpush1.msra.mxu0 %v361
    %1711 = vmatprep.subr.mxu0 %v358
    %1712 = vmatpush1.msra.mxu0 %v357
    %1713 = vmatprep.subr.mxu0 %v354
    %1714 = vmatpush1.msra.mxu0 %v353
    %1715 = vmatprep.subr.mxu0 %v350
    %1716 = vmatpush1.msra.mxu0 %v349
    %1717 = vmatprep.subr.mxu0 %v346
    %1718 = vmatpush1.msra.mxu0 %v345
    %1719 = vmatprep.subr.mxu0 %v342
    %1720 = vmatpush1.msra.mxu0 %v341
    %1721 = vmatprep.subr.mxu0 %v338
    %1722 = vmatpush1.msra.mxu0 %v337
    %1723 = vmatprep.subr.mxu0 %v334
    %1724 = vmatpush1.msra.mxu0 %v333
    %1725 = vmatprep.subr.mxu0 %v330
    %1726 = vmatpush1.msra.mxu0 %v329
    %1727 = vmatprep.subr.mxu0 %v326
    %1728 = vmatpush1.msra.mxu0 %v325
    %1729 = vmatprep.subr.mxu0 %v322
    %1730 = vmatpush1.msra.mxu0 %v321
    %1731 = vmatprep.subr.mxu0 %v318
    %1732 = vmatpush1.msra.mxu0 %v317
    %1733 = vmatprep.subr.mxu0 0.0
    %1734 = vmatpush2.msra.mxu0 0.0
    %1735 = vmatprep.subr.mxu0 0.0
    %1736 = vmatpush2.msra.mxu0 0.0
    %1737 = vmatprep.subr.mxu0 0.0
    %1738 = vmatpush2.msra.mxu0 0.0
    %1739 = vmatprep.subr.mxu0 0.0
    %1740 = vmatpush2.msra.mxu0 0.0
    %1741 = vmatprep.subr.mxu0 0.0
    %1742 = vmatpush2.msra.mxu0 0.0
    %1743 = vmatprep.subr.mxu0 0.0
    %1744 = vmatpush2.msra.mxu0 0.0
    %1745 = vmatprep.subr.mxu0 0.0
    %1746 = vmatpush2.msra.mxu0 0.0
    %1747 = vmatprep.subr.mxu0 0.0
    %1748 = vmatpush2.msra.mxu0 0.0
    %1749 = vmatprep.subr.mxu0 0.0
    %1750 = vmatpush2.msra.mxu0 0.0
    %1751 = vmatprep.subr.mxu0 0.0
    %1752 = vmatpush2.msra.mxu0 0.0
    %1753 = vmatprep.subr.mxu0 0.0
    %1754 = vmatpush2.msra.mxu0 0.0
    %1755 = vmatprep.subr.mxu0 0.0
    %1756 = vmatpush2.msra.mxu0 0.0
    %1757 = vmatprep.subr.mxu0 0.0
    %1758 = vmatpush2.msra.mxu0 0.0
    %1759 = vmatprep.subr.mxu0 0.0
    %1760 = vmatpush2.msra.mxu0 0.0
    %1761 = vmatprep.subr.mxu0 0.0
    %1762 = vmatpush2.msra.mxu0 0.0
    %1763 = vmatprep.subr.mxu0 0.0
    %1764 = vmatpush2.msra.mxu0 0.0
    %1765 = vmatprep.mubr.f32.mxu0 0.0
    %1766 = vmatmul.mubr.f32.gmra.mxu0 %v1699
    %v1767 = vpop.f32.mrf.mxu0
    %v1768 = vadd.f32 0.0, %v1767
    %v1769 = vpop.f32.mrf.mxu0
    %v1770 = vadd.f32 0.0, %v1769
    %1771 = vdwg.mxu0
    %1772 = vmatprep.subr.mxu0 %v380
    %1773 = vmatpush1.msra.mxu0 %v379
    %1774 = vmatprep.subr.mxu0 %v376
    %1775 = vmatpush1.msra.mxu0 %v375
    %1776 = vmatprep.subr.mxu0 %v372
    %1777 = vmatpush1.msra.mxu0 %v371
    %1778 = vmatprep.subr.mxu0 %v368
    %1779 = vmatpush1.msra.mxu0 %v367
    %1780 = vmatprep.subr.mxu0 %v364
    %1781 = vmatpush1.msra.mxu0 %v363
    %1782 = vmatprep.subr.mxu0 %v360
    %1783 = vmatpush1.msra.mxu0 %v359
    %1784 = vmatprep.subr.mxu0 %v356
    %1785 = vmatpush1.msra.mxu0 %v355
    %1786 = vmatprep.subr.mxu0 %v352
    %1787 = vmatpush1.msra.mxu0 %v351
    %1788 = vmatprep.subr.mxu0 %v348
    %1789 = vmatpush1.msra.mxu0 %v347
    %1790 = vmatprep.subr.mxu0 %v344
    %1791 = vmatpush1.msra.mxu0 %v343
    %1792 = vmatprep.subr.mxu0 %v340
    %1793 = vmatpush1.msra.mxu0 %v339
    %1794 = vmatprep.subr.mxu0 %v336
    %1795 = vmatpush1.msra.mxu0 %v335
    %1796 = vmatprep.subr.mxu0 %v332
    %1797 = vmatpush1.msra.mxu0 %v331
    %1798 = vmatprep.subr.mxu0 %v328
    %1799 = vmatpush1.msra.mxu0 %v327
    %1800 = vmatprep.subr.mxu0 %v324
    %1801 = vmatpush1.msra.mxu0 %v323
    %1802 = vmatprep.subr.mxu0 %v320
    %1803 = vmatpush1.msra.mxu0 %v319
    %1804 = vmatprep.subr.mxu0 0.0
    %1805 = vmatpush2.msra.mxu0 0.0
    %1806 = vmatprep.subr.mxu0 0.0
    %1807 = vmatpush2.msra.mxu0 0.0
    %1808 = vmatprep.subr.mxu0 0.0
    %1809 = vmatpush2.msra.mxu0 0.0
    %1810 = vmatprep.subr.mxu0 0.0
    %1811 = vmatpush2.msra.mxu0 0.0
    %1812 = vmatprep.subr.mxu0 0.0
    %1813 = vmatpush2.msra.mxu0 0.0
    %1814 = vmatprep.subr.mxu0 0.0
    %1815 = vmatpush2.msra.mxu0 0.0
    %1816 = vmatprep.subr.mxu0 0.0
    %1817 = vmatpush2.msra.mxu0 0.0
    %1818 = vmatprep.subr.mxu0 0.0
    %1819 = vmatpush2.msra.mxu0 0.0
    %1820 = vmatprep.subr.mxu0 0.0
    %1821 = vmatpush2.msra.mxu0 0.0
    %1822 = vmatprep.subr.mxu0 0.0
    %1823 = vmatpush2.msra.mxu0 0.0
    %1824 = vmatprep.subr.mxu0 0.0
    %1825 = vmatpush2.msra.mxu0 0.0
    %1826 = vmatprep.subr.mxu0 0.0
    %1827 = vmatpush2.msra.mxu0 0.0
    %1828 = vmatprep.subr.mxu0 0.0
    %1829 = vmatpush2.msra.mxu0 0.0
    %1830 = vmatprep.subr.mxu0 0.0
    %1831 = vmatpush2.msra.mxu0 0.0
    %1832 = vmatprep.subr.mxu0 0.0
    %1833 = vmatpush2.msra.mxu0 0.0
    %1834 = vmatprep.subr.mxu0 0.0
    %1835 = vmatpush2.msra.mxu0 0.0
    %1836 = vmatprep.mubr.f32.mxu0 0.0
    %1837 = vmatmul.mubr.f32.gmra.mxu0 %v1699
    %v1838 = vpop.f32.mrf.mxu0
    %v1839 = vadd.f32 0.0, %v1838
    %v1840 = vpop.f32.mrf.mxu0
    %v1841 = vadd.f32 0.0, %v1840
    %1842 = vdwg.mxu0
    %v1843 = vadd.f32 %v187, %v1768
    %v1844 = vadd.f32 %v189, %v1770
    %v1845 = vadd.f32 %v282, %v1839
    %v1846 = vadd.f32 %v284, %v1841
    %v1847 = vxor.u32 %v1843, 2147483648
    %v1848 = vxor.u32 %v1844, 2147483648
    %v1849 = vxor.u32 %v1845, 2147483648
    %v1850 = vxor.u32 %v1846, 2147483648
    %v1851 = vmul.f32 %v1847, 1.442695
    %v1852 = vpow.pop %v1851
    %v1853 = vmul.f32 %v1848, 1.442695
    %v1854 = vpow.pop %v1853
    %v1855 = vmul.f32 %v1849, 1.442695
    %v1856 = vpow.pop %v1855
    %v1857 = vmul.f32 %v1850, 1.442695
    %v1858 = vpow.pop %v1857
    %v1859 = vadd.f32 %v1852, 1.0
    %v1860 = vadd.f32 %v1854, 1.0
    %v1861 = vadd.f32 %v1856, 1.0
    %v1862 = vadd.f32 %v1858, 1.0
    %v1863 = vrcp.pop %v1859
    %v1864 = vmul.f32 1.0, %v1863
    %v1865 = vrcp.pop %v1860
    %v1866 = vmul.f32 1.0, %v1865
    %v1867 = vrcp.pop %v1861
    %v1868 = vmul.f32 1.0, %v1867
    %v1869 = vrcp.pop %v1862
    %v1870 = vmul.f32 1.0, %v1869
    %v1871 = vmul.f32 %v1868, 2.0
    %v1872 = vsub.f32 %v1871, 1.0
    %v1874 = vrot.slane %v1695, 4
    %v1876 = vmul.f32 %v1866, %v1874
    %v1877 = vmul.f32 %v1864, %v1872
    %v1878 = vadd.f32 %v1876, %v1877
    %v1879 = vtanh.pop %v1878
    %v1880 = vmul.f32 %v1870, %v1879
    %v1881 = vrot.slane %v572, 7
    %v1884 = vrot.slane %v755, 2
    %v1886 = vrot.slane %v947, 5
    %v1888 = vrot.slane %v1322, 3
    %v1891 = vrot.slane %v1505, 6
    %v1893 = vrot.slane %v1697, 1
    %v1896 = vrot.slane %v1880, 4
    %vm1898 = vcmask 1040384
    %v1899 = vsel %vm1898, %v1881, %v1884
    %vm1900 = vcmask 1041408
    %v1901 = vsel %vm1900, %v1899, %v1886
    %v1902 = vsel %vm87, %v1901, %v1130
    %vm1903 = vcmask 1043456
    %v1904 = vsel %vm1903, %v1902, %v1888
    %vm1905 = vcmask 1044480
    %v1906 = vsel %vm1905, %v1904, %v1891
    %vm1907 = vcmask 1045504
    %v1908 = vsel %vm1907, %v1906, %v1893
    %vm1909 = vcmask 1046528
    %v1910 = vsel %vm1909, %v1908, %v1896
    %v1911 = vld [vmem:[%s4] sm:$0xff]
    %v1912 = vld [vmem:[%s4 + $0x8] sm:$0xff]
    %v1913 = vld [vmem:[%s4 + $0x10] sm:$0xff]
    %v1914 = vld [vmem:[%s4 + $0x18] sm:$0xff]
    %v1915 = vld [vmem:[%s4 + $0x20] sm:$0xff]
    %v1916 = vld [vmem:[%s4 + $0x28] sm:$0xff]
    %v1917 = vld [vmem:[%s4 + $0x30] sm:$0xff]
    %v1918 = vld [vmem:[%s4 + $0x38] sm:$0xff]
    %v1919 = vld [vmem:[%s5] sm:$0x1]
    %v1921 = vlaneseq
    %v1922 = vshrl.u32 %v1921, 7
    %v1923 = vsub.s32 0, %v1922
    %v1924 = vrot.slane %v1919, %v1923
    %1927 = vrot.lane.b32.xlu0 %v1910, 64
    %v1928 = vpop.permute.xlu0 %1927
    %vm1929 = vcmask 523264
    %v1930 = vsel %vm1929, %v1928, 0
    %1932 = vmatprep.subr.mxu0 0.0
    %1933 = vmatpush1.msra.mxu0 0.0
    %1934 = vmatprep.subr.mxu0 0.0
    %1935 = vmatpush1.msra.mxu0 0.0
    %1936 = vmatprep.subr.mxu0 0.0
    %1937 = vmatpush1.msra.mxu0 0.0
    %1938 = vmatprep.subr.mxu0 0.0
    %1939 = vmatpush1.msra.mxu0 0.0
    %1940 = vmatprep.subr.mxu0 0.0
    %1941 = vmatpush1.msra.mxu0 0.0
    %1942 = vmatprep.subr.mxu0 0.0
    %1943 = vmatpush1.msra.mxu0 0.0
    %1944 = vmatprep.subr.mxu0 0.0
    %1945 = vmatpush1.msra.mxu0 0.0
    %1946 = vmatprep.subr.mxu0 0.0
    %1947 = vmatpush1.msra.mxu0 0.0
    %1948 = vmatprep.subr.mxu0 0.0
    %1949 = vmatpush1.msra.mxu0 %v1918
    %1950 = vmatprep.subr.mxu0 0.0
    %1951 = vmatpush1.msra.mxu0 %v1917
    %1952 = vmatprep.subr.mxu0 0.0
    %1953 = vmatpush1.msra.mxu0 %v1916
    %1954 = vmatprep.subr.mxu0 0.0
    %1955 = vmatpush1.msra.mxu0 %v1915
    %1956 = vmatprep.subr.mxu0 0.0
    %1957 = vmatpush1.msra.mxu0 %v1914
    %1958 = vmatprep.subr.mxu0 0.0
    %1959 = vmatpush1.msra.mxu0 %v1913
    %1960 = vmatprep.subr.mxu0 0.0
    %1961 = vmatpush1.msra.mxu0 %v1912
    %1962 = vmatprep.subr.mxu0 0.0
    %1963 = vmatpush1.msra.mxu0 %v1911
    %1964 = vmatprep.subr.mxu0 0.0
    %1965 = vmatpush2.msra.mxu0 0.0
    %1966 = vmatprep.subr.mxu0 0.0
    %1967 = vmatpush2.msra.mxu0 0.0
    %1968 = vmatprep.subr.mxu0 0.0
    %1969 = vmatpush2.msra.mxu0 0.0
    %1970 = vmatprep.subr.mxu0 0.0
    %1971 = vmatpush2.msra.mxu0 0.0
    %1972 = vmatprep.subr.mxu0 0.0
    %1973 = vmatpush2.msra.mxu0 0.0
    %1974 = vmatprep.subr.mxu0 0.0
    %1975 = vmatpush2.msra.mxu0 0.0
    %1976 = vmatprep.subr.mxu0 0.0
    %1977 = vmatpush2.msra.mxu0 0.0
    %1978 = vmatprep.subr.mxu0 0.0
    %1979 = vmatpush2.msra.mxu0 0.0
    %1980 = vmatprep.subr.mxu0 0.0
    %1981 = vmatpush2.msra.mxu0 0.0
    %1982 = vmatprep.subr.mxu0 0.0
    %1983 = vmatpush2.msra.mxu0 0.0
    %1984 = vmatprep.subr.mxu0 0.0
    %1985 = vmatpush2.msra.mxu0 0.0
    %1986 = vmatprep.subr.mxu0 0.0
    %1987 = vmatpush2.msra.mxu0 0.0
    %1988 = vmatprep.subr.mxu0 0.0
    %1989 = vmatpush2.msra.mxu0 0.0
    %1990 = vmatprep.subr.mxu0 0.0
    %1991 = vmatpush2.msra.mxu0 0.0
    %1992 = vmatprep.subr.mxu0 0.0
    %1993 = vmatpush2.msra.mxu0 0.0
    %1994 = vmatprep.subr.mxu0 0.0
    %1995 = vmatpush2.msra.mxu0 0.0
    %1996 = vmatprep.mubr.f32.mxu0 0.0
    %1997 = vmatmul.mubr.f32.gmra.mxu0 %v1930
    %v1998 = vpop.f32.mrf.mxu0
    %v1999 = vadd.f32 %v1924, %v1998
    %v2000 = vpop.f32.mrf.mxu0
    %2001 = vdwg.mxu0
    %2002 = vst [vmem:[#allocation5] sm:$0xff] %v1999
    // Predicated region
    $region30: #{forward.1} parent=1 // pred_check
      _
    $region31: #{forward.1} parent=1 // pred_check_branch
      %2004 = sbr.rel (0) target = $region33
    $region32: #{forward.1} parent=1 // pred_region
      %s2006 = ssub.s32 128, 128
      %2007 = vsyncadd [#allocation4], %s2006
      %s2009 = sshll.u32 [#allocation5], 4
      %s2010 = int_to_ptr.vmem [resolvable:$true] %s2009
      %2012 = dma.vmem_to_hbm [thread:$0]  %s2010, 128, %s6, [#allocation4]
    $region33: #{forward.1} parent=1 // pred_fallthru
      _
    // Predicated region
    $region34: #{forward.1} parent=1 // pred_check
      _
    $region35: #{forward.1} parent=1 // pred_check_branch
      %2014 = sbr.rel (0) target = $region37
    $region36: #{forward.1} parent=1 // pred_region
      %2015 = dma.done [#allocation4], 128
    $region37: #{forward.1} parent=1 // pred_fallthru
      _
    %2016 = vsyncpa [#allocation3], 1
    %2017 = vsyncpa [#allocation4], 1

</llo_original>
